<compile_context>
chip_gen: v7x
topology: tpu7x:2x2x1
jax: 0.10.0
libtpu: 0.0.40
codegen_flags: <defaults>
</compile_context>

<pallas_src>
import functools
import numpy as np
import jax
import jax.numpy as jnp
from jax.experimental import pallas as pl
from jax.experimental.pallas import tpu as pltpu

# MXU input dtype (accumulation stays f32).  bf16 = ~2x MXU on v5e, ~4x+ on v6e/v7x.
_MM_DTYPE = jnp.bfloat16

_VMEM_LIMIT = 64 * 1024 * 1024  # raise scoped VMEM above the 16/32 MiB defaults


def _cparams(n_parallel):
    return pltpu.CompilerParams(dimension_semantics=("parallel",) * n_parallel,
                                vmem_limit_bytes=_VMEM_LIMIT)


_PAR1 = _cparams(1)
_PAR2 = _cparams(2)


# ----------------------------- math helpers ---------------------------------
def _erf(x):
    # Abramowitz & Stegun 7.1.26 (max abs err ~1.5e-7) -> exact-erf GELU as torch.nn.GELU().
    a1, a2, a3, a4, a5 = 0.254829592, -0.284496736, 1.421413741, -1.453152027, 1.061405429
    p = 0.3275911
    sgn = jnp.where(x >= 0.0, 1.0, -1.0)
    xa = jnp.abs(x)
    t = 1.0 / (1.0 + p * xa)
    poly = ((((a5 * t + a4) * t + a3) * t + a2) * t + a1) * t
    return sgn * (1.0 - poly * jnp.exp(-xa * xa))


def _layernorm(x, g, b, eps):
    mu = jnp.mean(x, axis=-1, keepdims=True)
    xc = x - mu
    var = jnp.mean(xc * xc, axis=-1, keepdims=True)
    return xc * jax.lax.rsqrt(var + eps) * g + b


# ----------------------------- Pallas kernels -------------------------------
def _ln_qkv_kernel(x_ref, g_ref, b_ref, wq_ref, bq_ref, wkv_ref, bkv_ref,
                   q_ref, kv_ref, *, eps):
    """Fused LayerNorm1 -> (q, kv) projections (two lane-dense outputs)."""
    y = _layernorm(x_ref[...].astype(jnp.float32), g_ref[...], b_ref[...], eps)
    ym = y.astype(_MM_DTYPE)
    q_ref[...] = (jnp.dot(ym, wq_ref[...], preferred_element_type=jnp.float32)
                  + bq_ref[...]).astype(q_ref.dtype)
    kv_ref[...] = (jnp.dot(ym, wkv_ref[...], preferred_element_type=jnp.float32)
                   + bkv_ref[...]).astype(kv_ref.dtype)


def _proj_add_kernel(a_ref, lepe_ref, res_ref, w_ref, b_ref, o_ref):
    """Fused (attn + lepe) @ Wo + bo + residual."""
    a = a_ref[...].astype(jnp.float32) + lepe_ref[...].astype(jnp.float32)
    o = (jnp.dot(a.astype(_MM_DTYPE), w_ref[...], preferred_element_type=jnp.float32)
         + b_ref[...] + res_ref[...].astype(jnp.float32))
    o_ref[...] = o.astype(o_ref.dtype)


def _ln_mlp_add_kernel(x_ref, g_ref, b_ref, w1_ref, b1_ref, w2_ref, b2_ref, o_ref, *, eps):
    """Fused residual + fc2(GELU(fc1(LayerNorm2(x))))."""
    x = x_ref[...].astype(jnp.float32)
    y = _layernorm(x, g_ref[...], b_ref[...], eps)
    h = jnp.dot(y.astype(_MM_DTYPE), w1_ref[...], preferred_element_type=jnp.float32) + b1_ref[...]
    h = 0.5 * h * (1.0 + _erf(h * 0.7071067811865476))          # exact (erf) GELU
    o = (jnp.dot(h.astype(_MM_DTYPE), w2_ref[...], preferred_element_type=jnp.float32)
         + b2_ref[...] + x)
    o_ref[...] = o.astype(o_ref.dtype)


def _routed_attn_kernel(r_ref, q_ref, *rest, scale, heads, qk, C, hw, ww, topk):
    """Routed windowed MHA on image-layout blocks.

    refs = (routing SMEM table [unused in body], q window block (1,hw,ww,qk),
            topk gathered kv window blocks (1,hw,ww,qk+C), out block (1,hw,ww,C)).
    The top-k gather already happened in the input DMA via the scalar-prefetched
    routing table; here we split heads in-VMEM, run ONE fat QK^T and ONE PV matmul
    over all heads x all topk windows with an exact joint softmax, and write the
    result lane-dense in image layout (no un-window transpose downstream).
    """
    del r_ref
    kv_refs = rest[:topk]
    o_ref = rest[topk]
    w2 = hw * ww
    dh, dv = qk // heads, C // heads

    q = q_ref[0].reshape(w2, qk).astype(jnp.float32) * scale                 # (w2, qk)
    kv_all = jnp.concatenate([kv_refs[t][0].reshape(w2, qk + C)
                              for t in range(topk)], axis=0)                 # (topk*w2, qk+C)

    # in-kernel head split (head-major channel grouping, matching '(m c)' in the reference)
    qh = jnp.stack([q[:, h * dh:(h + 1) * dh] for h in range(heads)], 0).astype(_MM_DTYPE)
    kh = jnp.stack([kv_all[:, h * dh:(h + 1) * dh] for h in range(heads)], 0).astype(_MM_DTYPE)
    vh = jnp.stack([kv_all[:, qk + h * dv: qk + (h + 1) * dv]
                    for h in range(heads)], 0).astype(_MM_DTYPE)

    s = jnp.einsum("hqd,hkd->hqk", qh, kh, preferred_element_type=jnp.float32)
    m = jnp.max(s, axis=-1, keepdims=True)
    p = jnp.exp(s - m)
    l = jnp.sum(p, axis=-1, keepdims=True)
    o = jnp.einsum("hqk,hkd->hqd", p.astype(_MM_DTYPE), vh,
                   preferred_element_type=jnp.float32)
    o = o * pl.reciprocal(l, approx=True)

    # head merge -> lane-dense (w2, C), then back to the (hw, ww, C) image block
    o2 = jnp.concatenate([o[h] for h in range(heads)], axis=-1)
    o_ref[0] = o2.reshape(hw, ww, C).astype(o_ref.dtype)


def _lepe_dwconv_kernel(kv_ref, w_ref, b_ref, o_ref, xp_ref, *, H, W, K, qk, C):
    """LePE depthwise KxK conv.  Selects V channels from the kv block and builds the
    zero-padded image in a VMEM scratch (no HBM slice / pad copies)."""
    pad = K // 2
    v = kv_ref[0][:, :, qk:].astype(jnp.float32)                     # (H, W, C)
    xp_ref[...] = jnp.zeros(xp_ref.shape, jnp.float32)
    xp_ref[pl.ds(pad, H), pl.ds(pad, W), :] = v
    xp = xp_ref[...]
    w = w_ref[...].astype(jnp.float32)
    acc = jnp.zeros((H, W, C), jnp.float32)
    # TODO(synk): at large H*W tile over rows with a halo and use pltpu.roll for kw shifts.
    for kh in range(K):
        for kw in range(K):
            acc = acc + xp[kh:kh + H, kw:kw + W, :] * w[kh, kw, :]
    o_ref[0] = (acc + b_ref[0]).astype(o_ref.dtype)


# ----------------------------- Pallas wrappers ------------------------------
def _row_tile(M, cap=512):
    """Largest row tile <= cap that divides M; prefer multiples of 8 and >=2 grid steps
    (keeps both v7x TensorCores busy).  Never silently exceeds the cap."""
    cands = [t for t in range(8, min(cap, M) + 1, 8) if M % t == 0]
    if cands:
        multi = [t for t in cands if M // t >= 2]
        return max(multi) if multi else max(cands)
    for t in range(min(cap, M), 0, -1):
        if M % t == 0:
            return t
    return M


def pallas_ln_qkv(x2d, g, b, wq, bq, wkv, bkv, eps):
    M, C = x2d.shape
    nq, nkv = wq.shape[1], wkv.shape[1]
    tm = _row_tile(M, cap=512)
    return pl.pallas_call(
        functools.partial(_ln_qkv_kernel, eps=eps),
        out_shape=(jax.ShapeDtypeStruct((M, nq), x2d.dtype),
                   jax.ShapeDtypeStruct((M, nkv), x2d.dtype)),
        grid=(M // tm,),
        in_specs=[pl.BlockSpec((tm, C), lambda i: (i, 0)),
                  pl.BlockSpec((1, C), lambda i: (0, 0)),
                  pl.BlockSpec((1, C), lambda i: (0, 0)),
                  pl.BlockSpec((C, nq), lambda i: (0, 0)),
                  pl.BlockSpec((1, nq), lambda i: (0, 0)),
                  pl.BlockSpec((C, nkv), lambda i: (0, 0)),
                  pl.BlockSpec((1, nkv), lambda i: (0, 0))],
        out_specs=(pl.BlockSpec((tm, nq), lambda i: (i, 0)),
                   pl.BlockSpec((tm, nkv), lambda i: (i, 0))),
        compiler_params=_PAR1,
    )(x2d, g.reshape(1, C), b.reshape(1, C), wq, bq.reshape(1, nq), wkv, bkv.reshape(1, nkv))


def pallas_proj_add(a2d, lepe2d, res2d, w, b):
    M, C = a2d.shape
    Nout = w.shape[1]
    tm = _row_tile(M, cap=512)
    return pl.pallas_call(
        _proj_add_kernel,
        out_shape=jax.ShapeDtypeStruct((M, Nout), a2d.dtype),
        grid=(M // tm,),
        in_specs=[pl.BlockSpec((tm, C), lambda i: (i, 0)),
                  pl.BlockSpec((tm, C), lambda i: (i, 0)),
                  pl.BlockSpec((tm, Nout), lambda i: (i, 0)),
                  pl.BlockSpec((C, Nout), lambda i: (0, 0)),
                  pl.BlockSpec((1, Nout), lambda i: (0, 0))],
        out_specs=pl.BlockSpec((tm, Nout), lambda i: (i, 0)),
        compiler_params=_PAR1,
    )(a2d, lepe2d, res2d, w, b.reshape(1, Nout))


def pallas_ln_mlp_add(x2d, g, b, w1, b1, w2, b2, eps):
    M, C = x2d.shape
    Hd = w1.shape[1]
    # cap=256: the (tm, Hd) f32 intermediate + weights must also fit v7x's 64 MiB VMEM.
    tm = _row_tile(M, cap=256)
    return pl.pallas_call(
        functools.partial(_ln_mlp_add_kernel, eps=eps),
        out_shape=jax.ShapeDtypeStruct((M, C), x2d.dtype),
        grid=(M // tm,),
        in_specs=[pl.BlockSpec((tm, C), lambda i: (i, 0)),
                  pl.BlockSpec((1, C), lambda i: (0, 0)),
                  pl.BlockSpec((1, C), lambda i: (0, 0)),
                  pl.BlockSpec((C, Hd), lambda i: (0, 0)),
                  pl.BlockSpec((1, Hd), lambda i: (0, 0)),
                  pl.BlockSpec((Hd, C), lambda i: (0, 0)),
                  pl.BlockSpec((1, C), lambda i: (0, 0))],
        out_specs=pl.BlockSpec((tm, C), lambda i: (i, 0)),
        compiler_params=_PAR1,
    )(x2d, g.reshape(1, C), b.reshape(1, C), w1, b1.reshape(1, Hd), w2, b2.reshape(1, C))


def pallas_routed_attention(r_idx, q_img, kv_img, *, scale, heads, qk, C, nwin, hw, ww, topk):
    """q_img: (N,H,W,qk), kv_img: (N,H,W,qk+C), r_idx: (N,p2,topk) routed window ids.

    Scalar-prefetched routing table drives the kv BlockSpec index_maps, so window
    partition + top-k gather happen during the input DMA and the un-window happens
    in the output BlockSpec (image-layout, lane-dense last dim)."""
    N, H, W, _ = q_img.shape
    p2 = nwin * nwin
    r_flat = r_idx.reshape(-1).astype(jnp.int32)    # flat 1-D SMEM table

    q_spec = pl.BlockSpec((1, hw, ww, qk), lambda n, p, r: (n, p // nwin, p % nwin, 0))
    o_spec = pl.BlockSpec((1, hw, ww, C), lambda n, p, r: (n, p // nwin, p % nwin, 0))

    def routed(t):
        def index_map(n, p, r):
            win = r[(n * p2 + p) * topk + t]
            return (n, win // nwin, win % nwin, 0)
        return pl.BlockSpec((1, hw, ww, qk + C), index_map)

    grid_spec = pltpu.PrefetchScalarGridSpec(
        num_scalar_prefetch=1,
        grid=(N, p2),
        in_specs=[q_spec] + [routed(t) for t in range(topk)],
        out_specs=o_spec,
    )
    kern = functools.partial(_routed_attn_kernel, scale=scale, heads=heads,
                             qk=qk, C=C, hw=hw, ww=ww, topk=topk)
    return pl.pallas_call(
        kern,
        out_shape=jax.ShapeDtypeStruct((N, H, W, C), q_img.dtype),
        grid_spec=grid_spec,
        compiler_params=_PAR2,
    )(r_flat, q_img, *([kv_img] * topk))


def pallas_lepe_dwconv(kv_img, w, b, K, qk):
    N, H, W, CK = kv_img.shape
    C = CK - qk
    pad = K // 2
    return pl.pallas_call(
        functools.partial(_lepe_dwconv_kernel, H=H, W=W, K=K, qk=qk, C=C),
        out_shape=jax.ShapeDtypeStruct((N, H, W, C), kv_img.dtype),
        grid=(N,),
        in_specs=[pl.BlockSpec((1, H, W, CK), lambda n: (n, 0, 0, 0)),
                  pl.BlockSpec((K, K, C), lambda n: (0, 0, 0)),
                  pl.BlockSpec((1, C), lambda n: (0, 0))],
        out_specs=pl.BlockSpec((1, H, W, C), lambda n: (n, 0, 0, 0)),
        scratch_shapes=[pltpu.VMEM((H + 2 * pad, W + 2 * pad, C), jnp.float32)],
        compiler_params=_PAR1,
    )(kv_img, w, b.reshape(1, C))


# ------------------------------ Pallas forward -------------------------------
def biformer_block_pallas(x, P, cfg):
    N, H, W, C = x.shape
    nwin, heads = cfg["n_win"], cfg["num_heads"]
    qk, topk, K = cfg["qk_dim"], cfg["topk"], cfg["side_dwconv"]
    assert H % nwin == 0 and W % nwin == 0
    assert qk % heads == 0 and C % heads == 0
    hw, ww = H // nwin, W // nwin
    p2 = nwin * nwin
    scale = qk ** -0.5
    eps = 1e-6   # the PyTorch block uses nn.LayerNorm(dim, eps=1e-06) for both norms

    mm = lambda w: w.astype(_MM_DTYPE)   # pre-cast weights once (halves weight DMA too)
    x_flat = x.reshape(-1, C)

    # ---- LN1 + qkv projection (two lane-dense outputs, no HBM channel slicing) ----
    wq, wkv = P["qkv_w"][:, :qk], P["qkv_w"][:, qk:]
    bq, bkv = P["qkv_b"][:qk], P["qkv_b"][qk:]
    q2d, kv2d = pallas_ln_qkv(x_flat, P["ln1_g"], P["ln1_b"], mm(wq), bq, mm(wkv), bkv, eps)
    q_img = q2d.reshape(N, H, W, qk)
    kv_img = kv2d.reshape(N, H, W, qk + C)

    # ---- window-level routing (tiny p2 x p2 problem, indices only: mul_weight='none') ----
    # linear(window-mean(LN(x))) == window-mean(linear(LN(x))): computed in plain f32 JAX
    # so top-k selection stays numerically robust to bf16 rounding in the Pallas matmuls.
    xn = _layernorm(x, P["ln1_g"], P["ln1_b"], eps)
    xn_win = xn.reshape(N, nwin, hw, nwin, ww, C).mean(axis=(2, 4)).reshape(N, p2, C)
    q_win = xn_win @ wq + bq
    k_win = xn_win @ wkv[:, :qk] + bkv[:qk]
    logits = jnp.einsum("npc,nqc->npq", q_win * scale, k_win)
    _, r_idx = jax.lax.top_k(logits, topk)                              # (N, p2, topk)

    # ---- routed windowed MHA straight on image-layout tensors ----
    attn = pallas_routed_attention(r_idx, q_img, kv_img, scale=scale, heads=heads,
                                   qk=qk, C=C, nwin=nwin, hw=hw, ww=ww, topk=topk)

    # ---- LePE depthwise conv over the V channels of the (un-windowed) kv image ----
    lepe = pallas_lepe_dwconv(kv_img, P["lepe_w"], P["lepe_b"], K, qk)

    # ---- fused (attn + lepe) @ wo + bo + residual   (drop_path = Identity) ----
    x1 = pallas_proj_add(attn.reshape(-1, C), lepe.reshape(-1, C), x_flat,
                         mm(P["wo_w"]), P["wo_b"])

    # ---- fused residual + fc2(GELU(fc1(LN2(x1)))) ----
    y = pallas_ln_mlp_add(x1, P["ln2_g"], P["ln2_b"], mm(P["fc1_w"]), P["fc1_b"],
                          mm(P["fc2_w"]), P["fc2_b"], eps)
    return y.reshape(N, H, W, C)


# ----------------------- pure-JAX f32 reference (for check) ------------------
def biformer_block_ref(x, P, cfg):
    N, H, W, C = x.shape
    nwin, heads = cfg["n_win"], cfg["num_heads"]
    qk, topk, K = cfg["qk_dim"], cfg["topk"], cfg["side_dwconv"]
    hw, ww = H // nwin, W // nwin
    p2, w2 = nwin * nwin, hw * ww
    dh, dv = qk // heads, C // heads
    scale = qk ** -0.5

    def ln(t, g, b, eps=1e-6):
        mu = t.mean(-1, keepdims=True)
        var = ((t - mu) ** 2).mean(-1, keepdims=True)
        return (t - mu) / jnp.sqrt(var + eps) * g + b

    xn = ln(x, P["ln1_g"], P["ln1_b"])
    qkv = xn @ P["qkv_w"] + P["qkv_b"]
    q_img, kv_img = qkv[..., :qk], qkv[..., qk:]
    v_img = kv_img[..., qk:]

    def to_windows(t):
        c = t.shape[-1]
        t = t.reshape(N, nwin, hw, nwin, ww, c)
        return t.transpose(0, 1, 3, 2, 4, 5).reshape(N, p2, hw, ww, c)

    q_w, kv_w = to_windows(q_img), to_windows(kv_img)
    q_pix = q_w.reshape(N, p2, w2, qk)
    kv_pix = kv_w.reshape(N, p2, w2, qk + C)
    q_win = q_w.mean(axis=(2, 3))
    k_win = kv_w[..., :qk].mean(axis=(2, 3))

    pad = K // 2
    xp = jnp.pad(v_img, ((0, 0), (pad, pad), (pad, pad), (0, 0)))
    lepe = jnp.zeros_like(v_img)
    for kh_ in range(K):
        for kw_ in range(K):
            lepe = lepe + xp[:, kh_:kh_ + H, kw_:kw_ + W, :] * P["lepe_w"][kh_, kw_, :]
    lepe = lepe + P["lepe_b"]

    logits = jnp.einsum("npc,nqc->npq", q_win * scale, k_win)
    _, r_idx = jax.lax.top_k(logits, topk)
    kv_sel = jax.vmap(lambda kv_, idx: kv_[idx])(kv_pix, r_idx)         # (N,p2,topk,w2,qk+C)
    k_sel = kv_sel[..., :qk].reshape(N, p2, topk * w2, qk)
    v_sel = kv_sel[..., qk:].reshape(N, p2, topk * w2, C)

    qh = q_pix.reshape(N, p2, w2, heads, dh).transpose(0, 1, 3, 2, 4)
    kh = k_sel.reshape(N, p2, topk * w2, heads, dh).transpose(0, 1, 3, 2, 4)
    vh = v_sel.reshape(N, p2, topk * w2, heads, dv).transpose(0, 1, 3, 2, 4)
    s = jnp.einsum("nphqd,nphkd->nphqk", qh * scale, kh)
    p = jax.nn.softmax(s, axis=-1)
    oh = jnp.einsum("nphqk,nphkd->nphqd", p, vh)

    attn = oh.transpose(0, 1, 3, 2, 4).reshape(N, nwin, nwin, hw, ww, C)
    attn = attn.transpose(0, 1, 3, 2, 4, 5).reshape(N, H, W, C)
    x = x + (attn + lepe) @ P["wo_w"] + P["wo_b"]

    xn2 = ln(x, P["ln2_g"], P["ln2_b"])
    h = xn2 @ P["fc1_w"] + P["fc1_b"]
    h = 0.5 * h * (1.0 + jax.scipy.special.erf(h / jnp.sqrt(2.0)))
    return x + h @ P["fc2_w"] + P["fc2_b"]


# ------------------------------ params & main --------------------------------
def init_params(key, dim, qk_dim, mlp_ratio, side_dwconv):
    hid = int(mlp_ratio * dim)
    ks = jax.random.split(key, 12)
    n = lambda k, shp, s=0.05: s * jax.random.normal(k, shp, jnp.float32)
    return dict(
        ln1_g=1.0 + n(ks[0], (dim,), 0.1), ln1_b=n(ks[1], (dim,), 0.1),
        qkv_w=n(ks[2], (dim, 2 * qk_dim + dim)), qkv_b=n(ks[3], (2 * qk_dim + dim,), 0.02),
        wo_w=n(ks[4], (dim, dim)), wo_b=n(ks[5], (dim,), 0.02),
        lepe_w=n(ks[6], (side_dwconv, side_dwconv, dim)), lepe_b=n(ks[7], (dim,), 0.02),
        ln2_g=1.0 + n(ks[8], (dim,), 0.1), ln2_b=n(ks[9], (dim,), 0.1),
        fc1_w=n(ks[10], (dim, hid)), fc1_b=jnp.zeros((hid,), jnp.float32),
        fc2_w=n(ks[11], (hid, dim)), fc2_b=jnp.zeros((dim,), jnp.float32),
    )


if __name__ == "__main__":
    cfg = dict(dim=32, num_heads=8, n_win=4, qk_dim=32, topk=4, mlp_ratio=4, side_dwconv=5)
    N, H, W, C = 2, 32, 32, cfg["dim"]     # hw=ww=8 windows (8-sublane aligned blocks)

    key = jax.random.PRNGKey(0)
    kx, kp = jax.random.split(key)
    x = jax.random.normal(kx, (N, H, W, C), jnp.float32)
    P = init_params(kp, cfg["dim"], cfg["qk_dim"], cfg["mlp_ratio"], cfg["side_dwconv"])

    out = jax.block_until_ready(biformer_block_pallas(x, P, cfg))
    assert out.shape == (N, H, W, C)

    ref = jax.block_until_ready(biformer_block_ref(x, P, cfg))
    # bf16 MXU inputs (f32 accumulation) vs the all-f32 reference -> relaxed tolerance.
    np.testing.assert_allclose(np.asarray(out), np.asarray(ref), atol=2e-2, rtol=2e-2)

    print("KERNEL_OK")
</pallas_src>

<mosaic_0001>
module attributes {stable_mosaic.version = 11 : i64} {
  func.func @_ln_qkv_kernel(%arg0: i32, %arg1: memref<512x32xf32, #tpu.memory_space<vmem>>, %arg2: memref<1x32xf32, #tpu.memory_space<vmem>>, %arg3: memref<1x32xf32, #tpu.memory_space<vmem>>, %arg4: memref<32x32xbf16, #tpu.memory_space<vmem>>, %arg5: memref<1x32xf32, #tpu.memory_space<vmem>>, %arg6: memref<32x64xbf16, #tpu.memory_space<vmem>>, %arg7: memref<1x64xf32, #tpu.memory_space<vmem>>, %arg8: memref<512x32xf32, #tpu.memory_space<vmem>>, %arg9: memref<512x64xf32, #tpu.memory_space<vmem>>) attributes {dimension_semantics = [#tpu.dimension_semantics<parallel>], iteration_bounds = array<i64: 4>, scalar_prefetch = 0 : i64, scratch_operands = 0 : i64, tpu.core_type = #tpu.core_type<tc>, window_params = [{transform_indices = @transform_0, window_bounds = array<i64: 512, 32>}, {pipeline_mode = #tpu.pipeline_mode<synchronous>, transform_indices = @transform_1, window_bounds = array<i64: 1, 32>}, {pipeline_mode = #tpu.pipeline_mode<synchronous>, transform_indices = @transform_2, window_bounds = array<i64: 1, 32>}, {pipeline_mode = #tpu.pipeline_mode<synchronous>, transform_indices = @transform_3, window_bounds = array<i64: 32, 32>}, {pipeline_mode = #tpu.pipeline_mode<synchronous>, transform_indices = @transform_4, window_bounds = array<i64: 1, 32>}, {pipeline_mode = #tpu.pipeline_mode<synchronous>, transform_indices = @transform_5, window_bounds = array<i64: 32, 64>}, {pipeline_mode = #tpu.pipeline_mode<synchronous>, transform_indices = @transform_6, window_bounds = array<i64: 1, 64>}, {transform_indices = @transform_7, window_bounds = array<i64: 512, 32>}, {transform_indices = @transform_8, window_bounds = array<i64: 512, 64>}]} {
    %c0 = arith.constant 0 : index
    %c0_0 = arith.constant 0 : index
    %0 = vector.load %arg1[%c0, %c0_0] : memref<512x32xf32, #tpu.memory_space<vmem>>, vector<512x32xf32>
    %c0_1 = arith.constant 0 : index
    %c0_2 = arith.constant 0 : index
    %1 = vector.load %arg2[%c0_1, %c0_2] : memref<1x32xf32, #tpu.memory_space<vmem>>, vector<1x32xf32>
    %c0_3 = arith.constant 0 : index
    %c0_4 = arith.constant 0 : index
    %2 = vector.load %arg3[%c0_3, %c0_4] : memref<1x32xf32, #tpu.memory_space<vmem>>, vector<1x32xf32>
    %cst = arith.constant dense<0.000000e+00> : vector<512xf32>
    %3 = vector.multi_reduction <add>, %0, %cst [1] : vector<512x32xf32> to vector<512xf32>
    %4 = vector.shape_cast %3 : vector<512xf32> to vector<512x1xf32>
    %cst_5 = arith.constant 3.200000e+01 : f32
    %5 = vector.broadcast %cst_5 : f32 to vector<512x1xf32>
    %6 = arith.divf %4, %5 : vector<512x1xf32>
    %7 = vector.broadcast %6 : vector<512x1xf32> to vector<512x32xf32>
    %8 = arith.subf %0, %7 : vector<512x32xf32>
    %9 = arith.mulf %8, %8 : vector<512x32xf32>
    %cst_6 = arith.constant dense<0.000000e+00> : vector<512xf32>
    %10 = vector.multi_reduction <add>, %9, %cst_6 [1] : vector<512x32xf32> to vector<512xf32>
    %11 = vector.shape_cast %10 : vector<512xf32> to vector<512x1xf32>
    %cst_7 = arith.constant 3.200000e+01 : f32
    %12 = vector.broadcast %cst_7 : f32 to vector<512x1xf32>
    %13 = arith.divf %11, %12 : vector<512x1xf32>
    %cst_8 = arith.constant 9.99999997E-7 : f32
    %14 = vector.broadcast %cst_8 : f32 to vector<512x1xf32>
    %15 = arith.addf %13, %14 : vector<512x1xf32>
    %16 = math.rsqrt %15 : vector<512x1xf32>
    %17 = vector.broadcast %16 : vector<512x1xf32> to vector<512x32xf32>
    %18 = arith.mulf %8, %17 : vector<512x32xf32>
    %19 = vector.broadcast %1 : vector<1x32xf32> to vector<512x32xf32>
    %20 = arith.mulf %18, %19 : vector<512x32xf32>
    %21 = vector.broadcast %2 : vector<1x32xf32> to vector<512x32xf32>
    %22 = arith.addf %20, %21 : vector<512x32xf32>
    %23 = arith.truncf %22 : vector<512x32xf32> to vector<512x32xbf16>
    %c0_9 = arith.constant 0 : index
    %c0_10 = arith.constant 0 : index
    %24 = vector.load %arg4[%c0_9, %c0_10] : memref<32x32xbf16, #tpu.memory_space<vmem>>, vector<32x32xbf16>
    %cst_11 = arith.constant dense<0.000000e+00> : vector<512x32xf32>
    %25 = tpu.matmul %23, %24, %cst_11 {dimension_numbers = #tpu.dot_dimension_numbers<[1], [0], [0], [1], [0, 0, 1, 1], [], []>} : vector<512x32xbf16>, vector<32x32xbf16>, vector<512x32xf32> -> vector<512x32xf32>
    %c0_12 = arith.constant 0 : index
    %c0_13 = arith.constant 0 : index
    %26 = vector.load %arg5[%c0_12, %c0_13] : memref<1x32xf32, #tpu.memory_space<vmem>>, vector<1x32xf32>
    %27 = vector.broadcast %26 : vector<1x32xf32> to vector<512x32xf32>
    %28 = arith.addf %25, %27 : vector<512x32xf32>
    %c0_14 = arith.constant 0 : index
    %c0_15 = arith.constant 0 : index
    %29 = vector.load %arg8[%c0_14, %c0_15] : memref<512x32xf32, #tpu.memory_space<vmem>>, vector<512x32xf32>
    tpu.vector_store %arg8[%c0_14, %c0_15], %28 {strides = array<i32>} : memref<512x32xf32, #tpu.memory_space<vmem>>, vector<512x32xf32>,
    %c0_16 = arith.constant 0 : index
    %c0_17 = arith.constant 0 : index
    %30 = vector.load %arg6[%c0_16, %c0_17] : memref<32x64xbf16, #tpu.memory_space<vmem>>, vector<32x64xbf16>
    %cst_18 = arith.constant dense<0.000000e+00> : vector<512x64xf32>
    %31 = tpu.matmul %23, %30, %cst_18 {dimension_numbers = #tpu.dot_dimension_numbers<[1], [0], [0], [1], [0, 0, 1, 1], [], []>} : vector<512x32xbf16>, vector<32x64xbf16>, vector<512x64xf32> -> vector<512x64xf32>
    %c0_19 = arith.constant 0 : index
    %c0_20 = arith.constant 0 : index
    %32 = vector.load %arg7[%c0_19, %c0_20] : memref<1x64xf32, #tpu.memory_space<vmem>>, vector<1x64xf32>
    %33 = vector.broadcast %32 : vector<1x64xf32> to vector<512x64xf32>
    %34 = arith.addf %31, %33 : vector<512x64xf32>
    %c0_21 = arith.constant 0 : index
    %c0_22 = arith.constant 0 : index
    %35 = vector.load %arg9[%c0_21, %c0_22] : memref<512x64xf32, #tpu.memory_space<vmem>>, vector<512x64xf32>
    tpu.vector_store %arg9[%c0_21, %c0_22], %34 {strides = array<i32>} : memref<512x64xf32, #tpu.memory_space<vmem>>, vector<512x64xf32>,
    return
  }
  func.func @transform_0(%arg0: i32) -> (i32, i32) {
    %c0_i32 = arith.constant 0 : i32
    %c0_i32_0 = arith.constant 0 : i32
    return %arg0, %c0_i32 : i32, i32
  }
  func.func @transform_1(%arg0: i32) -> (i32, i32) {
    %c0_i32 = arith.constant 0 : i32
    %c0_i32_0 = arith.constant 0 : i32
    %c0_i32_1 = arith.constant 0 : i32
    return %c0_i32, %c0_i32_0 : i32, i32
  }
  func.func @transform_2(%arg0: i32) -> (i32, i32) {
    %c0_i32 = arith.constant 0 : i32
    %c0_i32_0 = arith.constant 0 : i32
    %c0_i32_1 = arith.constant 0 : i32
    return %c0_i32, %c0_i32_0 : i32, i32
  }
  func.func @transform_3(%arg0: i32) -> (i32, i32) {
    %c0_i32 = arith.constant 0 : i32
    %c0_i32_0 = arith.constant 0 : i32
    %c0_i32_1 = arith.constant 0 : i32
    return %c0_i32, %c0_i32_0 : i32, i32
  }
  func.func @transform_4(%arg0: i32) -> (i32, i32) {
    %c0_i32 = arith.constant 0 : i32
    %c0_i32_0 = arith.constant 0 : i32
    %c0_i32_1 = arith.constant 0 : i32
    return %c0_i32, %c0_i32_0 : i32, i32
  }
  func.func @transform_5(%arg0: i32) -> (i32, i32) {
    %c0_i32 = arith.constant 0 : i32
    %c0_i32_0 = arith.constant 0 : i32
    %c0_i32_1 = arith.constant 0 : i32
    return %c0_i32, %c0_i32_0 : i32, i32
  }
  func.func @transform_6(%arg0: i32) -> (i32, i32) {
    %c0_i32 = arith.constant 0 : i32
    %c0_i32_0 = arith.constant 0 : i32
    %c0_i32_1 = arith.constant 0 : i32
    return %c0_i32, %c0_i32_0 : i32, i32
  }
  func.func @transform_7(%arg0: i32) -> (i32, i32) {
    %c0_i32 = arith.constant 0 : i32
    %c0_i32_0 = arith.constant 0 : i32
    return %arg0, %c0_i32 : i32, i32
  }
  func.func @transform_8(%arg0: i32) -> (i32, i32) {
    %c0_i32 = arith.constant 0 : i32
    %c0_i32_0 = arith.constant 0 : i32
    return %arg0, %c0_i32 : i32, i32
  }
}

</mosaic_0001>

<llo_original>
// kernel: tpu_custom_call.1
$region0: #{tpu_custom_call.1}
  #allocation0 [shape = 'u32[]', space=smem, size = 0x4, offset = 0x4, fixed_abs, tag = 'smem constant byte address 0x4 - core index']
  #allocation1 [shape = 'u32[144,128]{1,0:T(1,128)}', space=vmem, size = 0x12000, scoped, tag = 'internal scratch']
  %s0 = inlined_call_operand.hbm [shape: f32[2048,32], index: 0, kind: input, shape index: {}]
  %s1 = inlined_call_operand.hbm [shape: f32[1,32], index: 1, kind: input, shape index: {}]
  %s2 = inlined_call_operand.hbm [shape: f32[1,32], index: 2, kind: input, shape index: {}]
  %s3 = inlined_call_operand.hbm [shape: bf16[32,32], index: 3, kind: input, shape index: {}]
  %s4 = inlined_call_operand.hbm [shape: f32[1,32], index: 4, kind: input, shape index: {}]
  %s5 = inlined_call_operand.hbm [shape: bf16[32,64], index: 5, kind: input, shape index: {}]
  %s6 = inlined_call_operand.hbm [shape: f32[1,64], index: 6, kind: input, shape index: {}]
  %s7 = inlined_call_operand.hbm [shape: f32[2048,32], index: 7, kind: output, shape index: {0}]
  %s8 = inlined_call_operand.hbm [shape: f32[2048,64], index: 8, kind: output, shape index: {1}]
  %9 = xla_tuple %s7, %s8
  %s10 = sld [smem:[#allocation0]]
  $region97: #{tpu_custom_call.1} parent=0
    _
  %s12 = ssub.s32 1, %s10
  %s13 = scalar_select 0, %s12, %s10
  $region1: #{tpu_custom_call.1} parent=0
    #allocation2 [shape = 'u8[524288]{0}', space=vmem, size = 0x80000, scoped, tag = 'input window, operand 0']
    #allocation3 [shape = 's32[2]{0}', space=sflag, size = 0x8, scoped, tag = 'scoped memory for tpu_custom_call.1']
    #allocation4 [shape = 's32[2]{0}', space=sflag, size = 0x8, scoped, tag = 'scoped memory for tpu_custom_call.1']
    #allocation5 [shape = 'u8[512]{0}', space=vmem, size = 0x400, scoped, tag = 'input window, operand 1, single buffered']
    #allocation6 [shape = 's32[1]{0}', space=sflag, size = 0x4, scoped, tag = 'scoped memory for tpu_custom_call.1']
    #allocation7 [shape = 'u8[512]{0}', space=vmem, size = 0x400, scoped, tag = 'input window, operand 2, single buffered']
    #allocation8 [shape = 'u8[8192]{0}', space=vmem, size = 0x2000, scoped, tag = 'input window, operand 3, single buffered']
    #allocation9 [shape = 's32[1]{0}', space=sflag, size = 0x4, scoped, tag = 'scoped memory for tpu_custom_call.1']
    #allocation10 [shape = 'u8[512]{0}', space=vmem, size = 0x400, scoped, tag = 'input window, operand 4, single buffered']
    #allocation11 [shape = 'u8[8192]{0}', space=vmem, size = 0x2000, scoped, tag = 'input window, operand 5, single buffered']
    #allocation12 [shape = 's32[1]{0}', space=sflag, size = 0x4, scoped, tag = 'scoped memory for tpu_custom_call.1']
    #allocation13 [shape = 'u8[512]{0}', space=vmem, size = 0x400, scoped, tag = 'input window, operand 6, single buffered']
    #allocation14 [shape = 'u8[524288]{0}', space=vmem, size = 0x80000, scoped, tag = 'output window, operand 0']
    #allocation15 [shape = 'u8[524288]{0}', space=vmem, size = 0x80000, scoped, tag = 'output window, operand 1']
    #allocation16 [shape = 's32[2]{0}', space=sflag, size = 0x8, scoped, tag = 'scoped memory for tpu_custom_call.1']
    %14 = vsyncpa [#allocation3], 0
    %s15 = scalar_lea.sflag [#allocation3], 1
    %16 = vsyncpa %s15, 0
    %17 = vsyncpa [#allocation6], 0
    %18 = vsyncpa [#allocation9], 0
    %19 = vsyncpa [#allocation12], 0
    %20 = vsyncpa [#allocation4], 0
    %s21 = scalar_lea.sflag [#allocation4], 1
    %22 = vsyncpa %s21, 0
    %23 = vsyncpa [#allocation16], 0
    %s24 = scalar_lea.sflag [#allocation16], 1
    %25 = vsyncpa %s24, 0
    loop: start=0, step=1, limit=6
    $region2: #{tpu_custom_call.1} parent=1 // loop_pre_header
      _
    $region3: #{tpu_custom_call.1} parent=1 // loop_header
      %s27 = sphi 0, %s31
      %p28 = scmp.ge.s32.totalorder %s27, 6
      %s37 = sphi 0, %s39
      %s40 = sphi 0, %s37
      %s41 = sphi 0, %s40
      %s57 = sphi 0, %s41
      %s61 = sphi 0, %s61
      %s63 = sphi 0, %s61
      %s64 = sphi 0, %s63
      %s78 = sphi 0, %s64
      %s82 = sphi 0, %s82
      %s84 = sphi 0, %s82
      %s85 = sphi 0, %s84
      %s99 = sphi 0, %s85
      %s103 = sphi 0, %s103
      %s105 = sphi 0, %s103
      %s106 = sphi 0, %s105
      %s120 = sphi 0, %s106
      %s124 = sphi 0, %s124
      %s126 = sphi 0, %s124
      %s127 = sphi 0, %s126
      %s141 = sphi 0, %s127
      %s145 = sphi 0, %s145
      %s147 = sphi 0, %s145
      %s148 = sphi 0, %s147
      %s162 = sphi 0, %s148
      %s166 = sphi 0, %s166
      %s168 = sphi 0, %s166
      %s169 = sphi 0, %s168
      %s183 = sphi 0, %s169
      %s189 = sphi 0, %s191
      %s192 = sphi 0, %s189
      %s193 = sphi 0, %s192
      %s209 = sphi 0, %s193
      %s215 = sphi 0, %s217
      %s218 = sphi 0, %s215
      %s219 = sphi 0, %s218
      %s235 = sphi 0, %s219
    $region4: #{tpu_custom_call.1} parent=1 // loop_header_branch
      %30 = sbr.rel (%p28) target = $region8
    $region5: #{tpu_custom_call.1} parent=1 // loop_body
      %s32 = ssub.s32 %s27, 1
      %s33 = ssub.s32 %s27, 2
      %s34 = sadd.s32 %s27, 1
      %s35 = ssub.s32 %s27, %s34
      %p36 = scmp.eq.s32.totalorder %s35, 0
      %s38 = sadd.s32 %s37, 1
      %s39 = scalar_select %p36, %s37, %s38
      %p42 = pneg %p36
      %p43 = scmp.eq.s32.totalorder %s27, 3
      %p44 = por %p42, %p43
      %p45 = scmp.ne.s32.totalorder %s37, %s40
      %p46 = scmp.eq.s32.totalorder %s27, 0
      %p47 = por %p45, %p46
      %p48 = scmp.ne.s32.totalorder %s37, %s40
      %p49 = scmp.eq.s32.totalorder %s32, 3
      %p50 = por %p48, %p49
      %p51 = scmp.ne.s32.totalorder %s40, %s41
      %p52 = scmp.eq.s32.totalorder %s32, 0
      %p53 = por %p51, %p52
      %p54 = scmp.ne.s32.totalorder %s40, %s41
      %p55 = scmp.eq.s32.totalorder %s33, 3
      %p56 = por %p54, %p55
      %p58 = scmp.ne.s32.totalorder %s41, %s57
      %p59 = scmp.eq.s32.totalorder %s33, 0
      %p60 = por %p58, %p59
      %s62 = sadd.s32 %s61, 1
      %p65 = scmp.eq.s32.totalorder %s27, 3
      %p66 = scmp.ne.s32.totalorder %s61, %s63
      %p67 = scmp.eq.s32.totalorder %s27, 0
      %p68 = por %p66, %p67
      %p69 = scmp.ne.s32.totalorder %s61, %s63
      %p70 = scmp.eq.s32.totalorder %s32, 3
      %p71 = por %p69, %p70
      %p72 = scmp.ne.s32.totalorder %s63, %s64
      %p73 = scmp.eq.s32.totalorder %s32, 0
      %p74 = por %p72, %p73
      %p75 = scmp.ne.s32.totalorder %s63, %s64
      %p76 = scmp.eq.s32.totalorder %s33, 3
      %p77 = por %p75, %p76
      %p79 = scmp.ne.s32.totalorder %s64, %s78
      %p80 = scmp.eq.s32.totalorder %s33, 0
      %p81 = por %p79, %p80
      %s83 = sadd.s32 %s82, 1
      %p86 = scmp.eq.s32.totalorder %s27, 3
      %p87 = scmp.ne.s32.totalorder %s82, %s84
      %p88 = scmp.eq.s32.totalorder %s27, 0
      %p89 = por %p87, %p88
      %p90 = scmp.ne.s32.totalorder %s82, %s84
      %p91 = scmp.eq.s32.totalorder %s32, 3
      %p92 = por %p90, %p91
      %p93 = scmp.ne.s32.totalorder %s84, %s85
      %p94 = scmp.eq.s32.totalorder %s32, 0
      %p95 = por %p93, %p94
      %p96 = scmp.ne.s32.totalorder %s84, %s85
      %p97 = scmp.eq.s32.totalorder %s33, 3
      %p98 = por %p96, %p97
      %p100 = scmp.ne.s32.totalorder %s85, %s99
      %p101 = scmp.eq.s32.totalorder %s33, 0
      %p102 = por %p100, %p101
      %s104 = sadd.s32 %s103, 1
      %p107 = scmp.eq.s32.totalorder %s27, 3
      %p108 = scmp.ne.s32.totalorder %s103, %s105
      %p109 = scmp.eq.s32.totalorder %s27, 0
      %p110 = por %p108, %p109
      %p111 = scmp.ne.s32.totalorder %s103, %s105
      %p112 = scmp.eq.s32.totalorder %s32, 3
      %p113 = por %p111, %p112
      %p114 = scmp.ne.s32.totalorder %s105, %s106
      %p115 = scmp.eq.s32.totalorder %s32, 0
      %p116 = por %p114, %p115
      %p117 = scmp.ne.s32.totalorder %s105, %s106
      %p118 = scmp.eq.s32.totalorder %s33, 3
      %p119 = por %p117, %p118
      %p121 = scmp.ne.s32.totalorder %s106, %s120
      %p122 = scmp.eq.s32.totalorder %s33, 0
      %p123 = por %p121, %p122
      %s125 = sadd.s32 %s124, 1
      %p128 = scmp.eq.s32.totalorder %s27, 3
      %p129 = scmp.ne.s32.totalorder %s124, %s126
      %p130 = scmp.eq.s32.totalorder %s27, 0
      %p131 = por %p129, %p130
      %p132 = scmp.ne.s32.totalorder %s124, %s126
      %p133 = scmp.eq.s32.totalorder %s32, 3
      %p134 = por %p132, %p133
      %p135 = scmp.ne.s32.totalorder %s126, %s127
      %p136 = scmp.eq.s32.totalorder %s32, 0
      %p137 = por %p135, %p136
      %p138 = scmp.ne.s32.totalorder %s126, %s127
      %p139 = scmp.eq.s32.totalorder %s33, 3
      %p140 = por %p138, %p139
      %p142 = scmp.ne.s32.totalorder %s127, %s141
      %p143 = scmp.eq.s32.totalorder %s33, 0
      %p144 = por %p142, %p143
      %s146 = sadd.s32 %s145, 1
      %p149 = scmp.eq.s32.totalorder %s27, 3
      %p150 = scmp.ne.s32.totalorder %s145, %s147
      %p151 = scmp.eq.s32.totalorder %s27, 0
      %p152 = por %p150, %p151
      %p153 = scmp.ne.s32.totalorder %s145, %s147
      %p154 = scmp.eq.s32.totalorder %s32, 3
      %p155 = por %p153, %p154
      %p156 = scmp.ne.s32.totalorder %s147, %s148
      %p157 = scmp.eq.s32.totalorder %s32, 0
      %p158 = por %p156, %p157
      %p159 = scmp.ne.s32.totalorder %s147, %s148
      %p160 = scmp.eq.s32.totalorder %s33, 3
      %p161 = por %p159, %p160
      %p163 = scmp.ne.s32.totalorder %s148, %s162
      %p164 = scmp.eq.s32.totalorder %s33, 0
      %p165 = por %p163, %p164
      %s167 = sadd.s32 %s166, 1
      %p170 = scmp.eq.s32.totalorder %s27, 3
      %p171 = scmp.ne.s32.totalorder %s166, %s168
      %p172 = scmp.eq.s32.totalorder %s27, 0
      %p173 = por %p171, %p172
      %p174 = scmp.ne.s32.totalorder %s166, %s168
      %p175 = scmp.eq.s32.totalorder %s32, 3
      %p176 = por %p174, %p175
      %p177 = scmp.ne.s32.totalorder %s168, %s169
      %p178 = scmp.eq.s32.totalorder %s32, 0
      %p179 = por %p177, %p178
      %p180 = scmp.ne.s32.totalorder %s168, %s169
      %p181 = scmp.eq.s32.totalorder %s33, 3
      %p182 = por %p180, %p181
      %p184 = scmp.ne.s32.totalorder %s169, %s183
      %p185 = scmp.eq.s32.totalorder %s33, 0
      %p186 = por %p184, %p185
      %s187 = ssub.s32 %s27, %s34
      %p188 = scmp.eq.s32.totalorder %s187, 0
      %s190 = sadd.s32 %s189, 1
      %s191 = scalar_select %p188, %s189, %s190
      %p194 = pneg %p188
      %p195 = scmp.eq.s32.totalorder %s27, 3
      %p196 = por %p194, %p195
      %p197 = scmp.ne.s32.totalorder %s189, %s192
      %p198 = scmp.eq.s32.totalorder %s27, 0
      %p199 = por %p197, %p198
      %p200 = scmp.ne.s32.totalorder %s189, %s192
      %p201 = scmp.eq.s32.totalorder %s32, 3
      %p202 = por %p200, %p201
      %p203 = scmp.ne.s32.totalorder %s192, %s193
      %p204 = scmp.eq.s32.totalorder %s32, 0
      %p205 = por %p203, %p204
      %p206 = scmp.ne.s32.totalorder %s192, %s193
      %p207 = scmp.eq.s32.totalorder %s33, 3
      %p208 = por %p206, %p207
      %p210 = scmp.ne.s32.totalorder %s193, %s209
      %p211 = scmp.eq.s32.totalorder %s33, 0
      %p212 = por %p210, %p211
      %s213 = ssub.s32 %s27, %s34
      %p214 = scmp.eq.s32.totalorder %s213, 0
      %s216 = sadd.s32 %s215, 1
      %s217 = scalar_select %p214, %s215, %s216
      %p220 = pneg %p214
      %p221 = scmp.eq.s32.totalorder %s27, 3
      %p222 = por %p220, %p221
      %p223 = scmp.ne.s32.totalorder %s215, %s218
      %p224 = scmp.eq.s32.totalorder %s27, 0
      %p225 = por %p223, %p224
      %p226 = scmp.ne.s32.totalorder %s215, %s218
      %p227 = scmp.eq.s32.totalorder %s32, 3
      %p228 = por %p226, %p227
      %p229 = scmp.ne.s32.totalorder %s218, %s219
      %p230 = scmp.eq.s32.totalorder %s32, 0
      %p231 = por %p229, %p230
      %p232 = scmp.ne.s32.totalorder %s218, %s219
      %p233 = scmp.eq.s32.totalorder %s33, 3
      %p234 = por %p232, %p233
      %p236 = scmp.ne.s32.totalorder %s219, %s235
      %p237 = scmp.eq.s32.totalorder %s33, 0
      %p238 = por %p236, %p237
      %p239 = scmp.le.s32.totalorder 1, %s27
      %p240 = scmp.lt.s32.totalorder %s27, 5
      %p241 = pnand %p239, %p240
      %p242 = pneg %p241
      // Predicated region
      $region9: #{tpu_custom_call.1} parent=5 // pred_check
        _
      $region10: #{tpu_custom_call.1} parent=5 // pred_check_branch
        %244 = sbr.rel (%p241) target = $region12
      $region11: #{tpu_custom_call.1} parent=5 // pred_region
        %s245 = ssub.s32 %s27, 1
        // Predicated region
        $region13: #{tpu_custom_call.1} parent=11 // pred_check
          %p246 = pneg %p74
        $region14: #{tpu_custom_call.1} parent=11 // pred_check_branch
          %248 = sbr.rel (%p246) target = $region16
        $region15: #{tpu_custom_call.1} parent=11 // pred_region
          %s250 = ssub.s32 16, 16
          %251 = vsyncadd [#allocation6], %s250
          %s253 = sshll.u32 [#allocation5], 4
          %s254 = int_to_ptr.vmem [resolvable:$true] %s253
          %256 = dma.hbm_to_vmem [thread:$0]  %s1, 16, %s254, [#allocation6]
        $region16: #{tpu_custom_call.1} parent=11 // pred_fallthru
          _
        // Predicated region
        $region17: #{tpu_custom_call.1} parent=11 // pred_check
          %p257 = pneg %p95
        $region18: #{tpu_custom_call.1} parent=11 // pred_check_branch
          %259 = sbr.rel (%p257) target = $region20
        $region19: #{tpu_custom_call.1} parent=11 // pred_region
          %s261 = ssub.s32 16, 16
          %262 = vsyncadd [#allocation6], %s261
          %s264 = sshll.u32 [#allocation7], 4
          %s265 = int_to_ptr.vmem [resolvable:$true] %s264
          %267 = dma.hbm_to_vmem [thread:$0]  %s2, 16, %s265, [#allocation6]
        $region20: #{tpu_custom_call.1} parent=11 // pred_fallthru
          _
        // Predicated region
        $region21: #{tpu_custom_call.1} parent=11 // pred_check
          %p268 = pneg %p116
        $region22: #{tpu_custom_call.1} parent=11 // pred_check_branch
          %270 = sbr.rel (%p268) target = $region24
        $region23: #{tpu_custom_call.1} parent=11 // pred_region
          %s272 = ssub.s32 256, 256
          %273 = vsyncadd [#allocation9], %s272
          %s274 = sshll.u32 [#allocation8], 4
          %s275 = int_to_ptr.vmem [resolvable:$true] %s274
          %280 = dma.hbm_to_vmem [thread:$0]  %s3, 256, %s275, [#allocation9], 64, 64, 4
        $region24: #{tpu_custom_call.1} parent=11 // pred_fallthru
          _
        // Predicated region
        $region25: #{tpu_custom_call.1} parent=11 // pred_check
          %p281 = pneg %p137
        $region26: #{tpu_custom_call.1} parent=11 // pred_check_branch
          %283 = sbr.rel (%p281) target = $region28
        $region27: #{tpu_custom_call.1} parent=11 // pred_region
          %s285 = ssub.s32 16, 16
          %286 = vsyncadd [#allocation9], %s285
          %s288 = sshll.u32 [#allocation10], 4
          %s289 = int_to_ptr.vmem [resolvable:$true] %s288
          %291 = dma.hbm_to_vmem [thread:$0]  %s4, 16, %s289, [#allocation9]
        $region28: #{tpu_custom_call.1} parent=11 // pred_fallthru
          _
        // Predicated region
        $region29: #{tpu_custom_call.1} parent=11 // pred_check
          %p292 = pneg %p158
        $region30: #{tpu_custom_call.1} parent=11 // pred_check_branch
          %294 = sbr.rel (%p292) target = $region32
        $region31: #{tpu_custom_call.1} parent=11 // pred_region
          %s296 = ssub.s32 256, 256
          %297 = vsyncadd [#allocation12], %s296
          %s298 = sshll.u32 [#allocation11], 4
          %s299 = int_to_ptr.vmem [resolvable:$true] %s298
          %304 = dma.hbm_to_vmem [thread:$0]  %s5, 256, %s299, [#allocation12], 64, 64, 4
        $region32: #{tpu_custom_call.1} parent=11 // pred_fallthru
          _
        // Predicated region
        $region33: #{tpu_custom_call.1} parent=11 // pred_check
          %p305 = pneg %p179
        $region34: #{tpu_custom_call.1} parent=11 // pred_check_branch
          %307 = sbr.rel (%p305) target = $region36
        $region35: #{tpu_custom_call.1} parent=11 // pred_region
          %s309 = ssub.s32 16, 16
          %310 = vsyncadd [#allocation12], %s309
          %s312 = sshll.u32 [#allocation13], 4
          %s313 = int_to_ptr.vmem [resolvable:$true] %s312
          %315 = dma.hbm_to_vmem [thread:$0]  %s6, 16, %s313, [#allocation12]
        $region36: #{tpu_custom_call.1} parent=11 // pred_fallthru
          _
      $region12: #{tpu_custom_call.1} parent=5 // pred_fallthru
        _
      %p316 = scmp.lt.s32.totalorder %s27, 4
      // Predicated region
      $region37: #{tpu_custom_call.1} parent=5 // pred_check
        %p317 = pneg %p316
      $region38: #{tpu_custom_call.1} parent=5 // pred_check_branch
        %319 = sbr.rel (%p317) target = $region40
      $region39: #{tpu_custom_call.1} parent=5 // pred_region
        // Predicated region
        $region41: #{tpu_custom_call.1} parent=39 // pred_check
          %p320 = pneg %p47
        $region42: #{tpu_custom_call.1} parent=39 // pred_check_branch
          %322 = sbr.rel (%p320) target = $region44
        $region43: #{tpu_custom_call.1} parent=39 // pred_region
          %s323 = sand.u32 %s37, 1
          %s324 = scalar_lea.sflag [#allocation3], %s323
          %s325 = sand.u32 %s37, 1
          %s326 = smul.addr %s325, 512
          %s327 = scalar_lea.vmem [#allocation2], %s326
          %s328 = smul.u32 64, %s27
          %s330 = ssub.s32 8192, 8192
          %331 = vsyncadd %s324, %s330
          %s332 = smul.addr %s328, 128
          %s333 = scalar_lea.hbm %s0, %s332
          %s334 = sshll.u32 %s327, 4
          %s335 = int_to_ptr.vmem [resolvable:$true] %s334
          %340 = dma.hbm_to_vmem [thread:$0]  %s333, 8192, %s335, %s324, 128, 128, 8
        $region44: #{tpu_custom_call.1} parent=39 // pred_fallthru
          _
      $region40: #{tpu_custom_call.1} parent=5 // pred_fallthru
        _
      %p341 = scmp.le.s32.totalorder 1, %s27
      %p342 = scmp.lt.s32.totalorder %s27, 5
      %p343 = pnand %p341, %p342
      %p344 = pneg %p343
      // Predicated region
      $region45: #{tpu_custom_call.1} parent=5 // pred_check
        _
      $region46: #{tpu_custom_call.1} parent=5 // pred_check_branch
        %346 = sbr.rel (%p343) target = $region48
      $region47: #{tpu_custom_call.1} parent=5 // pred_region
        %s347 = ssub.s32 %s27, 1
        %s348 = sand.u32 %s40, 1
        %s349 = scalar_lea.sflag [#allocation3], %s348
        %s350 = sand.u32 %s40, 1
        %s351 = smul.addr %s350, 512
        %s352 = scalar_lea.vmem [#allocation2], %s351
        // Predicated region
        $region49: #{tpu_custom_call.1} parent=47 // pred_check
          %p353 = pneg %p53
        $region50: #{tpu_custom_call.1} parent=47 // pred_check_branch
          %355 = sbr.rel (%p353) target = $region52
        $region51: #{tpu_custom_call.1} parent=47 // pred_region
          %356 = dma.done %s349, 8192
        $region52: #{tpu_custom_call.1} parent=47 // pred_fallthru
          _
        // Predicated region
        $region53: #{tpu_custom_call.1} parent=47 // pred_check
          %p357 = pneg %p74
        $region54: #{tpu_custom_call.1} parent=47 // pred_check_branch
          %359 = sbr.rel (%p357) target = $region56
        $region55: #{tpu_custom_call.1} parent=47 // pred_region
          %360 = dma.done [#allocation6], 16
        $region56: #{tpu_custom_call.1} parent=47 // pred_fallthru
          _
        // Predicated region
        $region57: #{tpu_custom_call.1} parent=47 // pred_check
          %p361 = pneg %p95
        $region58: #{tpu_custom_call.1} parent=47 // pred_check_branch
          %363 = sbr.rel (%p361) target = $region60
        $region59: #{tpu_custom_call.1} parent=47 // pred_region
          %364 = dma.done [#allocation6], 16
        $region60: #{tpu_custom_call.1} parent=47 // pred_fallthru
          _
        // Predicated region
        $region61: #{tpu_custom_call.1} parent=47 // pred_check
          %p365 = pneg %p116
        $region62: #{tpu_custom_call.1} parent=47 // pred_check_branch
          %367 = sbr.rel (%p365) target = $region64
        $region63: #{tpu_custom_call.1} parent=47 // pred_region
          %368 = dma.done [#allocation9], 256
        $region64: #{tpu_custom_call.1} parent=47 // pred_fallthru
          _
        // Predicated region
        $region65: #{tpu_custom_call.1} parent=47 // pred_check
          %p369 = pneg %p137
        $region66: #{tpu_custom_call.1} parent=47 // pred_check_branch
          %371 = sbr.rel (%p369) target = $region68
        $region67: #{tpu_custom_call.1} parent=47 // pred_region
          %372 = dma.done [#allocation9], 16
        $region68: #{tpu_custom_call.1} parent=47 // pred_fallthru
          _
        // Predicated region
        $region69: #{tpu_custom_call.1} parent=47 // pred_check
          %p373 = pneg %p158
        $region70: #{tpu_custom_call.1} parent=47 // pred_check_branch
          %375 = sbr.rel (%p373) target = $region72
        $region71: #{tpu_custom_call.1} parent=47 // pred_region
          %376 = dma.done [#allocation12], 256
        $region72: #{tpu_custom_call.1} parent=47 // pred_fallthru
          _
        // Predicated region
        $region73: #{tpu_custom_call.1} parent=47 // pred_check
          %p377 = pneg %p179
        $region74: #{tpu_custom_call.1} parent=47 // pred_check_branch
          %379 = sbr.rel (%p377) target = $region76
        $region75: #{tpu_custom_call.1} parent=47 // pred_region
          %380 = dma.done [#allocation12], 16
        $region76: #{tpu_custom_call.1} parent=47 // pred_fallthru
          _
        %s381 = sand.u32 %s40, 1
        %s382 = scalar_lea.sflag [#allocation3], %s381
        %s383 = sand.u32 %s40, 1
        %s384 = smul.addr %s383, 512
        %s385 = scalar_lea.vmem [#allocation2], %s384
        %p386 = pneg %p53
        %p387 = pneg %p50
        %p388 = pneg %p74
        %p389 = pneg %p71
        %p390 = pneg %p95
        %p391 = pneg %p92
        %p392 = pneg %p116
        %p393 = pneg %p113
        %p394 = pneg %p137
        %p395 = pneg %p134
        %p396 = pneg %p158
        %p397 = pneg %p155
        %p398 = pneg %p179
        %p399 = pneg %p176
        %p400 = pneg %p205
        %p401 = pneg %p202
        %s402 = sand.u32 %s192, 1
        %s403 = scalar_lea.sflag [#allocation4], %s402
        %s404 = sand.u32 %s192, 1
        %s405 = smul.addr %s404, 512
        %s406 = scalar_lea.vmem [#allocation14], %s405
        %p407 = pneg %p231
        %p408 = pneg %p228
        %s409 = sand.u32 %s218, 1
        %s410 = scalar_lea.sflag [#allocation16], %s409
        %s411 = sand.u32 %s218, 1
        %s412 = smul.addr %s411, 512
        %s413 = scalar_lea.vmem [#allocation15], %s412
        %s414 = smul.u32 64, %s32
        %s415 = smul.u32 64, %s32
        %s416 = smul.u32 64, %s32
        %v418 = vld [vmem:[%s352] sm:$0xff]
        %v419 = vld [vmem:[%s352 + $0x8] sm:$0xff]
        %v420 = vld [vmem:[%s352 + $0x10] sm:$0xff]
        %v421 = vld [vmem:[%s352 + $0x18] sm:$0xff]
        %v422 = vld [vmem:[%s352 + $0x20] sm:$0xff]
        %v423 = vld [vmem:[%s352 + $0x28] sm:$0xff]
        %v424 = vld [vmem:[%s352 + $0x30] sm:$0xff]
        %v425 = vld [vmem:[%s352 + $0x38] sm:$0xff]
        %v426 = vld [vmem:[%s352 + $0x40] sm:$0xff]
        %v427 = vld [vmem:[%s352 + $0x48] sm:$0xff]
        %v428 = vld [vmem:[%s352 + $0x50] sm:$0xff]
        %v429 = vld [vmem:[%s352 + $0x58] sm:$0xff]
        %v430 = vld [vmem:[%s352 + $0x60] sm:$0xff]
        %v431 = vld [vmem:[%s352 + $0x68] sm:$0xff]
        %v432 = vld [vmem:[%s352 + $0x70] sm:$0xff]
        %v433 = vld [vmem:[%s352 + $0x78] sm:$0xff]
        %v434 = vld [vmem:[%s352 + $0x80] sm:$0xff]
        %v435 = vld [vmem:[%s352 + $0x88] sm:$0xff]
        %v436 = vld [vmem:[%s352 + $0x90] sm:$0xff]
        %v437 = vld [vmem:[%s352 + $0x98] sm:$0xff]
        %v438 = vld [vmem:[%s352 + $0xa0] sm:$0xff]
        %v439 = vld [vmem:[%s352 + $0xa8] sm:$0xff]
        %v440 = vld [vmem:[%s352 + $0xb0] sm:$0xff]
        %v441 = vld [vmem:[%s352 + $0xb8] sm:$0xff]
        %v442 = vld [vmem:[%s352 + $0xc0] sm:$0xff]
        %v443 = vld [vmem:[%s352 + $0xc8] sm:$0xff]
        %v444 = vld [vmem:[%s352 + $0xd0] sm:$0xff]
        %v445 = vld [vmem:[%s352 + $0xd8] sm:$0xff]
        %v446 = vld [vmem:[%s352 + $0xe0] sm:$0xff]
        %v447 = vld [vmem:[%s352 + $0xe8] sm:$0xff]
        %v448 = vld [vmem:[%s352 + $0xf0] sm:$0xff]
        %v449 = vld [vmem:[%s352 + $0xf8] sm:$0xff]
        %v450 = vld [vmem:[%s352 + $0x100] sm:$0xff]
        %v451 = vld [vmem:[%s352 + $0x108] sm:$0xff]
        %v452 = vld [vmem:[%s352 + $0x110] sm:$0xff]
        %v453 = vld [vmem:[%s352 + $0x118] sm:$0xff]
        %v454 = vld [vmem:[%s352 + $0x120] sm:$0xff]
        %v455 = vld [vmem:[%s352 + $0x128] sm:$0xff]
        %v456 = vld [vmem:[%s352 + $0x130] sm:$0xff]
        %v457 = vld [vmem:[%s352 + $0x138] sm:$0xff]
        %v458 = vld [vmem:[%s352 + $0x140] sm:$0xff]
        %v459 = vld [vmem:[%s352 + $0x148] sm:$0xff]
        %v460 = vld [vmem:[%s352 + $0x150] sm:$0xff]
        %v461 = vld [vmem:[%s352 + $0x158] sm:$0xff]
        %v462 = vld [vmem:[%s352 + $0x160] sm:$0xff]
        %v463 = vld [vmem:[%s352 + $0x168] sm:$0xff]
        %v464 = vld [vmem:[%s352 + $0x170] sm:$0xff]
        %v465 = vld [vmem:[%s352 + $0x178] sm:$0xff]
        %v466 = vld [vmem:[%s352 + $0x180] sm:$0xff]
        %v467 = vld [vmem:[%s352 + $0x188] sm:$0xff]
        %v468 = vld [vmem:[%s352 + $0x190] sm:$0xff]
        %v469 = vld [vmem:[%s352 + $0x198] sm:$0xff]
        %v470 = vld [vmem:[%s352 + $0x1a0] sm:$0xff]
        %v471 = vld [vmem:[%s352 + $0x1a8] sm:$0xff]
        %v472 = vld [vmem:[%s352 + $0x1b0] sm:$0xff]
        %v473 = vld [vmem:[%s352 + $0x1b8] sm:$0xff]
        %v474 = vld [vmem:[%s352 + $0x1c0] sm:$0xff]
        %v475 = vld [vmem:[%s352 + $0x1c8] sm:$0xff]
        %v476 = vld [vmem:[%s352 + $0x1d0] sm:$0xff]
        %v477 = vld [vmem:[%s352 + $0x1d8] sm:$0xff]
        %v478 = vld [vmem:[%s352 + $0x1e0] sm:$0xff]
        %v479 = vld [vmem:[%s352 + $0x1e8] sm:$0xff]
        %v480 = vld [vmem:[%s352 + $0x1f0] sm:$0xff]
        %v481 = vld [vmem:[%s352 + $0x1f8] sm:$0xff]
        %v482 = vld [vmem:[#allocation5] sm:$0x1]
        %v483 = vld [vmem:[#allocation7] sm:$0x1]
        %vm484 = vcmask 261120
        %v485 = vsel %vm484, %v418, 0.0
        %486 = vadd.xlane.f32.xlu0 %v485
        %v487 = vpop.xlane.xlu0 %486
        %v488 = vsel %vm484, %v419, 0.0
        %489 = vadd.xlane.f32.xlu0 %v488
        %v490 = vpop.xlane.xlu0 %489
        %v491 = vsel %vm484, %v420, 0.0
        %492 = vadd.xlane.f32.xlu0 %v491
        %v493 = vpop.xlane.xlu0 %492
        %v494 = vsel %vm484, %v421, 0.0
        %495 = vadd.xlane.f32.xlu0 %v494
        %v496 = vpop.xlane.xlu0 %495
        %v497 = vsel %vm484, %v422, 0.0
        %498 = vadd.xlane.f32.xlu0 %v497
        %v499 = vpop.xlane.xlu0 %498
        %v500 = vsel %vm484, %v423, 0.0
        %501 = vadd.xlane.f32.xlu0 %v500
        %v502 = vpop.xlane.xlu0 %501
        %v503 = vsel %vm484, %v424, 0.0
        %504 = vadd.xlane.f32.xlu0 %v503
        %v505 = vpop.xlane.xlu0 %504
        %v506 = vsel %vm484, %v425, 0.0
        %507 = vadd.xlane.f32.xlu0 %v506
        %v508 = vpop.xlane.xlu0 %507
        %v509 = vsel %vm484, %v426, 0.0
        %510 = vadd.xlane.f32.xlu0 %v509
        %v511 = vpop.xlane.xlu0 %510
        %v512 = vsel %vm484, %v427, 0.0
        %513 = vadd.xlane.f32.xlu0 %v512
        %v514 = vpop.xlane.xlu0 %513
        %v515 = vsel %vm484, %v428, 0.0
        %516 = vadd.xlane.f32.xlu0 %v515
        %v517 = vpop.xlane.xlu0 %516
        %v518 = vsel %vm484, %v429, 0.0
        %519 = vadd.xlane.f32.xlu0 %v518
        %v520 = vpop.xlane.xlu0 %519
        %v521 = vsel %vm484, %v430, 0.0
        %522 = vadd.xlane.f32.xlu0 %v521
        %v523 = vpop.xlane.xlu0 %522
        %v524 = vsel %vm484, %v431, 0.0
        %525 = vadd.xlane.f32.xlu0 %v524
        %v526 = vpop.xlane.xlu0 %525
        %v527 = vsel %vm484, %v432, 0.0
        %528 = vadd.xlane.f32.xlu0 %v527
        %v529 = vpop.xlane.xlu0 %528
        %v530 = vsel %vm484, %v433, 0.0
        %531 = vadd.xlane.f32.xlu0 %v530
        %v532 = vpop.xlane.xlu0 %531
        %v533 = vsel %vm484, %v434, 0.0
        %534 = vadd.xlane.f32.xlu0 %v533
        %v535 = vpop.xlane.xlu0 %534
        %v536 = vsel %vm484, %v435, 0.0
        %537 = vadd.xlane.f32.xlu0 %v536
        %v538 = vpop.xlane.xlu0 %537
        %v539 = vsel %vm484, %v436, 0.0
        %540 = vadd.xlane.f32.xlu0 %v539
        %v541 = vpop.xlane.xlu0 %540
        %v542 = vsel %vm484, %v437, 0.0
        %543 = vadd.xlane.f32.xlu0 %v542
        %v544 = vpop.xlane.xlu0 %543
        %v545 = vsel %vm484, %v438, 0.0
        %546 = vadd.xlane.f32.xlu0 %v545
        %v547 = vpop.xlane.xlu0 %546
        %v548 = vsel %vm484, %v439, 0.0
        %549 = vadd.xlane.f32.xlu0 %v548
        %v550 = vpop.xlane.xlu0 %549
        %v551 = vsel %vm484, %v440, 0.0
        %552 = vadd.xlane.f32.xlu0 %v551
        %v553 = vpop.xlane.xlu0 %552
        %v554 = vsel %vm484, %v441, 0.0
        %555 = vadd.xlane.f32.xlu0 %v554
        %v556 = vpop.xlane.xlu0 %555
        %v557 = vsel %vm484, %v442, 0.0
        %558 = vadd.xlane.f32.xlu0 %v557
        %v559 = vpop.xlane.xlu0 %558
        %v560 = vsel %vm484, %v443, 0.0
        %561 = vadd.xlane.f32.xlu0 %v560
        %v562 = vpop.xlane.xlu0 %561
        %v563 = vsel %vm484, %v444, 0.0
        %564 = vadd.xlane.f32.xlu0 %v563
        %v565 = vpop.xlane.xlu0 %564
        %v566 = vsel %vm484, %v445, 0.0
        %567 = vadd.xlane.f32.xlu0 %v566
        %v568 = vpop.xlane.xlu0 %567
        %v569 = vsel %vm484, %v446, 0.0
        %570 = vadd.xlane.f32.xlu0 %v569
        %v571 = vpop.xlane.xlu0 %570
        %v572 = vsel %vm484, %v447, 0.0
        %573 = vadd.xlane.f32.xlu0 %v572
        %v574 = vpop.xlane.xlu0 %573
        %v575 = vsel %vm484, %v448, 0.0
        %576 = vadd.xlane.f32.xlu0 %v575
        %v577 = vpop.xlane.xlu0 %576
        %v578 = vsel %vm484, %v449, 0.0
        %579 = vadd.xlane.f32.xlu0 %v578
        %v580 = vpop.xlane.xlu0 %579
        %v581 = vsel %vm484, %v450, 0.0
        %582 = vadd.xlane.f32.xlu0 %v581
        %v583 = vpop.xlane.xlu0 %582
        %v584 = vsel %vm484, %v451, 0.0
        %585 = vadd.xlane.f32.xlu0 %v584
        %v586 = vpop.xlane.xlu0 %585
        %v587 = vsel %vm484, %v452, 0.0
        %588 = vadd.xlane.f32.xlu0 %v587
        %v589 = vpop.xlane.xlu0 %588
        %v590 = vsel %vm484, %v453, 0.0
        %591 = vadd.xlane.f32.xlu0 %v590
        %v592 = vpop.xlane.xlu0 %591
        %v593 = vsel %vm484, %v454, 0.0
        %594 = vadd.xlane.f32.xlu0 %v593
        %v595 = vpop.xlane.xlu0 %594
        %v596 = vsel %vm484, %v455, 0.0
        %597 = vadd.xlane.f32.xlu0 %v596
        %v598 = vpop.xlane.xlu0 %597
        %v599 = vsel %vm484, %v456, 0.0
        %600 = vadd.xlane.f32.xlu0 %v599
        %v601 = vpop.xlane.xlu0 %600
        %v602 = vsel %vm484, %v457, 0.0
        %603 = vadd.xlane.f32.xlu0 %v602
        %v604 = vpop.xlane.xlu0 %603
        %v605 = vsel %vm484, %v458, 0.0
        %606 = vadd.xlane.f32.xlu0 %v605
        %v607 = vpop.xlane.xlu0 %606
        %v608 = vsel %vm484, %v459, 0.0
        %609 = vadd.xlane.f32.xlu0 %v608
        %v610 = vpop.xlane.xlu0 %609
        %v611 = vsel %vm484, %v460, 0.0
        %612 = vadd.xlane.f32.xlu0 %v611
        %v613 = vpop.xlane.xlu0 %612
        %v614 = vsel %vm484, %v461, 0.0
        %615 = vadd.xlane.f32.xlu0 %v614
        %v616 = vpop.xlane.xlu0 %615
        %v617 = vsel %vm484, %v462, 0.0
        %618 = vadd.xlane.f32.xlu0 %v617
        %v619 = vpop.xlane.xlu0 %618
        %v620 = vsel %vm484, %v463, 0.0
        %621 = vadd.xlane.f32.xlu0 %v620
        %v622 = vpop.xlane.xlu0 %621
        %v623 = vsel %vm484, %v464, 0.0
        %624 = vadd.xlane.f32.xlu0 %v623
        %v625 = vpop.xlane.xlu0 %624
        %v626 = vsel %vm484, %v465, 0.0
        %627 = vadd.xlane.f32.xlu0 %v626
        %v628 = vpop.xlane.xlu0 %627
        %v629 = vsel %vm484, %v466, 0.0
        %630 = vadd.xlane.f32.xlu0 %v629
        %v631 = vpop.xlane.xlu0 %630
        %v632 = vsel %vm484, %v467, 0.0
        %633 = vadd.xlane.f32.xlu0 %v632
        %v634 = vpop.xlane.xlu0 %633
        %v635 = vsel %vm484, %v468, 0.0
        %636 = vadd.xlane.f32.xlu0 %v635
        %v637 = vpop.xlane.xlu0 %636
        %v638 = vsel %vm484, %v469, 0.0
        %639 = vadd.xlane.f32.xlu0 %v638
        %v640 = vpop.xlane.xlu0 %639
        %v641 = vsel %vm484, %v470, 0.0
        %642 = vadd.xlane.f32.xlu0 %v641
        %v643 = vpop.xlane.xlu0 %642
        %v644 = vsel %vm484, %v471, 0.0
        %645 = vadd.xlane.f32.xlu0 %v644
        %v646 = vpop.xlane.xlu0 %645
        %v647 = vsel %vm484, %v472, 0.0
        %648 = vadd.xlane.f32.xlu0 %v647
        %v649 = vpop.xlane.xlu0 %648
        %v650 = vsel %vm484, %v473, 0.0
        %651 = vadd.xlane.f32.xlu0 %v650
        %v652 = vpop.xlane.xlu0 %651
        %v653 = vsel %vm484, %v474, 0.0
        %654 = vadd.xlane.f32.xlu0 %v653
        %v655 = vpop.xlane.xlu0 %654
        %v656 = vsel %vm484, %v475, 0.0
        %657 = vadd.xlane.f32.xlu0 %v656
        %v658 = vpop.xlane.xlu0 %657
        %v659 = vsel %vm484, %v476, 0.0
        %660 = vadd.xlane.f32.xlu0 %v659
        %v661 = vpop.xlane.xlu0 %660
        %v662 = vsel %vm484, %v477, 0.0
        %663 = vadd.xlane.f32.xlu0 %v662
        %v664 = vpop.xlane.xlu0 %663
        %v665 = vsel %vm484, %v478, 0.0
        %666 = vadd.xlane.f32.xlu0 %v665
        %v667 = vpop.xlane.xlu0 %666
        %v668 = vsel %vm484, %v479, 0.0
        %669 = vadd.xlane.f32.xlu0 %v668
        %v670 = vpop.xlane.xlu0 %669
        %v671 = vsel %vm484, %v480, 0.0
        %672 = vadd.xlane.f32.xlu0 %v671
        %v673 = vpop.xlane.xlu0 %672
        %v674 = vsel %vm484, %v481, 0.0
        %675 = vadd.xlane.f32.xlu0 %v674
        %v676 = vpop.xlane.xlu0 %675
        %v677 = vrcp.pop 32.0
        %v678 = vmul.f32 %v487, %v677
        %v679 = vmul.f32 %v490, %v677
        %v680 = vmul.f32 %v493, %v677
        %v681 = vmul.f32 %v496, %v677
        %v682 = vmul.f32 %v499, %v677
        %v683 = vmul.f32 %v502, %v677
        %v684 = vmul.f32 %v505, %v677
        %v685 = vmul.f32 %v508, %v677
        %v686 = vmul.f32 %v511, %v677
        %v687 = vmul.f32 %v514, %v677
        %v688 = vmul.f32 %v517, %v677
        %v689 = vmul.f32 %v520, %v677
        %v690 = vmul.f32 %v523, %v677
        %v691 = vmul.f32 %v526, %v677
        %v692 = vmul.f32 %v529, %v677
        %v693 = vmul.f32 %v532, %v677
        %v694 = vmul.f32 %v535, %v677
        %v695 = vmul.f32 %v538, %v677
        %v696 = vmul.f32 %v541, %v677
        %v697 = vmul.f32 %v544, %v677
        %v698 = vmul.f32 %v547, %v677
        %v699 = vmul.f32 %v550, %v677
        %v700 = vmul.f32 %v553, %v677
        %v701 = vmul.f32 %v556, %v677
        %v702 = vmul.f32 %v559, %v677
        %v703 = vmul.f32 %v562, %v677
        %v704 = vmul.f32 %v565, %v677
        %v705 = vmul.f32 %v568, %v677
        %v706 = vmul.f32 %v571, %v677
        %v707 = vmul.f32 %v574, %v677
        %v708 = vmul.f32 %v577, %v677
        %v709 = vmul.f32 %v580, %v677
        %v710 = vmul.f32 %v583, %v677
        %v711 = vmul.f32 %v586, %v677
        %v712 = vmul.f32 %v589, %v677
        %v713 = vmul.f32 %v592, %v677
        %v714 = vmul.f32 %v595, %v677
        %v715 = vmul.f32 %v598, %v677
        %v716 = vmul.f32 %v601, %v677
        %v717 = vmul.f32 %v604, %v677
        %v718 = vmul.f32 %v607, %v677
        %v719 = vmul.f32 %v610, %v677
        %v720 = vmul.f32 %v613, %v677
        %v721 = vmul.f32 %v616, %v677
        %v722 = vmul.f32 %v619, %v677
        %v723 = vmul.f32 %v622, %v677
        %v724 = vmul.f32 %v625, %v677
        %v725 = vmul.f32 %v628, %v677
        %v726 = vmul.f32 %v631, %v677
        %v727 = vmul.f32 %v634, %v677
        %v728 = vmul.f32 %v637, %v677
        %v729 = vmul.f32 %v640, %v677
        %v730 = vmul.f32 %v643, %v677
        %v731 = vmul.f32 %v646, %v677
        %v732 = vmul.f32 %v649, %v677
        %v733 = vmul.f32 %v652, %v677
        %v734 = vmul.f32 %v655, %v677
        %v735 = vmul.f32 %v658, %v677
        %v736 = vmul.f32 %v661, %v677
        %v737 = vmul.f32 %v664, %v677
        %v738 = vmul.f32 %v667, %v677
        %v739 = vmul.f32 %v670, %v677
        %v740 = vmul.f32 %v673, %v677
        %v741 = vmul.f32 %v676, %v677
        %v742 = vsub.f32 %v418, %v678
        %v743 = vsub.f32 %v419, %v679
        %v744 = vsub.f32 %v420, %v680
        %v745 = vsub.f32 %v421, %v681
        %v746 = vsub.f32 %v422, %v682
        %v747 = vsub.f32 %v423, %v683
        %v748 = vsub.f32 %v424, %v684
        %v749 = vsub.f32 %v425, %v685
        %v750 = vsub.f32 %v426, %v686
        %v751 = vsub.f32 %v427, %v687
        %v752 = vsub.f32 %v428, %v688
        %v753 = vsub.f32 %v429, %v689
        %v754 = vsub.f32 %v430, %v690
        %v755 = vsub.f32 %v431, %v691
        %v756 = vsub.f32 %v432, %v692
        %v757 = vsub.f32 %v433, %v693
        %v758 = vsub.f32 %v434, %v694
        %v759 = vsub.f32 %v435, %v695
        %v760 = vsub.f32 %v436, %v696
        %v761 = vsub.f32 %v437, %v697
        %v762 = vsub.f32 %v438, %v698
        %v763 = vsub.f32 %v439, %v699
        %v764 = vsub.f32 %v440, %v700
        %v765 = vsub.f32 %v441, %v701
        %v766 = vsub.f32 %v442, %v702
        %v767 = vsub.f32 %v443, %v703
        %v768 = vsub.f32 %v444, %v704
        %v769 = vsub.f32 %v445, %v705
        %v770 = vsub.f32 %v446, %v706
        %v771 = vsub.f32 %v447, %v707
        %v772 = vsub.f32 %v448, %v708
        %v773 = vsub.f32 %v449, %v709
        %v774 = vsub.f32 %v450, %v710
        %v775 = vsub.f32 %v451, %v711
        %v776 = vsub.f32 %v452, %v712
        %v777 = vsub.f32 %v453, %v713
        %v778 = vsub.f32 %v454, %v714
        %v779 = vsub.f32 %v455, %v715
        %v780 = vsub.f32 %v456, %v716
        %v781 = vsub.f32 %v457, %v717
        %v782 = vsub.f32 %v458, %v718
        %v783 = vsub.f32 %v459, %v719
        %v784 = vsub.f32 %v460, %v720
        %v785 = vsub.f32 %v461, %v721
        %v786 = vsub.f32 %v462, %v722
        %v787 = vsub.f32 %v463, %v723
        %v788 = vsub.f32 %v464, %v724
        %v789 = vsub.f32 %v465, %v725
        %v790 = vsub.f32 %v466, %v726
        %v791 = vsub.f32 %v467, %v727
        %v792 = vsub.f32 %v468, %v728
        %v793 = vsub.f32 %v469, %v729
        %v794 = vsub.f32 %v470, %v730
        %v795 = vsub.f32 %v471, %v731
        %v796 = vsub.f32 %v472, %v732
        %v797 = vsub.f32 %v473, %v733
        %v798 = vsub.f32 %v474, %v734
        %v799 = vsub.f32 %v475, %v735
        %v800 = vsub.f32 %v476, %v736
        %v801 = vsub.f32 %v477, %v737
        %v802 = vsub.f32 %v478, %v738
        %v803 = vsub.f32 %v479, %v739
        %v804 = vsub.f32 %v480, %v740
        %v805 = vsub.f32 %v481, %v741
        %v806 = vmul.f32 %v742, %v742
        %v807 = vmul.f32 %v743, %v743
        %v808 = vmul.f32 %v744, %v744
        %v809 = vmul.f32 %v745, %v745
        %v810 = vmul.f32 %v746, %v746
        %v811 = vmul.f32 %v747, %v747
        %v812 = vmul.f32 %v748, %v748
        %v813 = vmul.f32 %v749, %v749
        %v814 = vmul.f32 %v750, %v750
        %v815 = vmul.f32 %v751, %v751
        %v816 = vmul.f32 %v752, %v752
        %v817 = vmul.f32 %v753, %v753
        %v818 = vmul.f32 %v754, %v754
        %v819 = vmul.f32 %v755, %v755
        %v820 = vmul.f32 %v756, %v756
        %v821 = vmul.f32 %v757, %v757
        %v822 = vmul.f32 %v758, %v758
        %v823 = vmul.f32 %v759, %v759
        %v824 = vmul.f32 %v760, %v760
        %v825 = vmul.f32 %v761, %v761
        %v826 = vmul.f32 %v762, %v762
        %v827 = vmul.f32 %v763, %v763
        %v828 = vmul.f32 %v764, %v764
        %v829 = vmul.f32 %v765, %v765
        %v830 = vmul.f32 %v766, %v766
        %v831 = vmul.f32 %v767, %v767
        %v832 = vmul.f32 %v768, %v768
        %v833 = vmul.f32 %v769, %v769
        %v834 = vmul.f32 %v770, %v770
        %v835 = vmul.f32 %v771, %v771
        %v836 = vmul.f32 %v772, %v772
        %v837 = vmul.f32 %v773, %v773
        %v838 = vmul.f32 %v774, %v774
        %v839 = vmul.f32 %v775, %v775
        %v840 = vmul.f32 %v776, %v776
        %v841 = vmul.f32 %v777, %v777
        %v842 = vmul.f32 %v778, %v778
        %v843 = vmul.f32 %v779, %v779
        %v844 = vmul.f32 %v780, %v780
        %v845 = vmul.f32 %v781, %v781
        %v846 = vmul.f32 %v782, %v782
        %v847 = vmul.f32 %v783, %v783
        %v848 = vmul.f32 %v784, %v784
        %v849 = vmul.f32 %v785, %v785
        %v850 = vmul.f32 %v786, %v786
        %v851 = vmul.f32 %v787, %v787
        %v852 = vmul.f32 %v788, %v788
        %v853 = vmul.f32 %v789, %v789
        %v854 = vmul.f32 %v790, %v790
        %v855 = vmul.f32 %v791, %v791
        %v856 = vmul.f32 %v792, %v792
        %v857 = vmul.f32 %v793, %v793
        %v858 = vmul.f32 %v794, %v794
        %v859 = vmul.f32 %v795, %v795
        %v860 = vmul.f32 %v796, %v796
        %v861 = vmul.f32 %v797, %v797
        %v862 = vmul.f32 %v798, %v798
        %v863 = vmul.f32 %v799, %v799
        %v864 = vmul.f32 %v800, %v800
        %v865 = vmul.f32 %v801, %v801
        %v866 = vmul.f32 %v802, %v802
        %v867 = vmul.f32 %v803, %v803
        %v868 = vmul.f32 %v804, %v804
        %v869 = vmul.f32 %v805, %v805
        %v870 = vsel %vm484, %v806, 0.0
        %871 = vadd.xlane.f32.xlu0 %v870
        %v872 = vpop.xlane.xlu0 %871
        %v873 = vsel %vm484, %v807, 0.0
        %874 = vadd.xlane.f32.xlu0 %v873
        %v875 = vpop.xlane.xlu0 %874
        %v876 = vsel %vm484, %v808, 0.0
        %877 = vadd.xlane.f32.xlu0 %v876
        %v878 = vpop.xlane.xlu0 %877
        %v879 = vsel %vm484, %v809, 0.0
        %880 = vadd.xlane.f32.xlu0 %v879
        %v881 = vpop.xlane.xlu0 %880
        %v882 = vsel %vm484, %v810, 0.0
        %883 = vadd.xlane.f32.xlu0 %v882
        %v884 = vpop.xlane.xlu0 %883
        %v885 = vsel %vm484, %v811, 0.0
        %886 = vadd.xlane.f32.xlu0 %v885
        %v887 = vpop.xlane.xlu0 %886
        %v888 = vsel %vm484, %v812, 0.0
        %889 = vadd.xlane.f32.xlu0 %v888
        %v890 = vpop.xlane.xlu0 %889
        %v891 = vsel %vm484, %v813, 0.0
        %892 = vadd.xlane.f32.xlu0 %v891
        %v893 = vpop.xlane.xlu0 %892
        %v894 = vsel %vm484, %v814, 0.0
        %895 = vadd.xlane.f32.xlu0 %v894
        %v896 = vpop.xlane.xlu0 %895
        %v897 = vsel %vm484, %v815, 0.0
        %898 = vadd.xlane.f32.xlu0 %v897
        %v899 = vpop.xlane.xlu0 %898
        %v900 = vsel %vm484, %v816, 0.0
        %901 = vadd.xlane.f32.xlu0 %v900
        %v902 = vpop.xlane.xlu0 %901
        %v903 = vsel %vm484, %v817, 0.0
        %904 = vadd.xlane.f32.xlu0 %v903
        %v905 = vpop.xlane.xlu0 %904
        %v906 = vsel %vm484, %v818, 0.0
        %907 = vadd.xlane.f32.xlu0 %v906
        %v908 = vpop.xlane.xlu0 %907
        %v909 = vsel %vm484, %v819, 0.0
        %910 = vadd.xlane.f32.xlu0 %v909
        %v911 = vpop.xlane.xlu0 %910
        %v912 = vsel %vm484, %v820, 0.0
        %913 = vadd.xlane.f32.xlu0 %v912
        %v914 = vpop.xlane.xlu0 %913
        %v915 = vsel %vm484, %v821, 0.0
        %916 = vadd.xlane.f32.xlu0 %v915
        %v917 = vpop.xlane.xlu0 %916
        %v918 = vsel %vm484, %v822, 0.0
        %919 = vadd.xlane.f32.xlu0 %v918
        %v920 = vpop.xlane.xlu0 %919
        %v921 = vsel %vm484, %v823, 0.0
        %922 = vadd.xlane.f32.xlu0 %v921
        %v923 = vpop.xlane.xlu0 %922
        %v924 = vsel %vm484, %v824, 0.0
        %925 = vadd.xlane.f32.xlu0 %v924
        %v926 = vpop.xlane.xlu0 %925
        %v927 = vsel %vm484, %v825, 0.0
        %928 = vadd.xlane.f32.xlu0 %v927
        %v929 = vpop.xlane.xlu0 %928
        %v930 = vsel %vm484, %v826, 0.0
        %931 = vadd.xlane.f32.xlu0 %v930
        %v932 = vpop.xlane.xlu0 %931
        %v933 = vsel %vm484, %v827, 0.0
        %934 = vadd.xlane.f32.xlu0 %v933
        %v935 = vpop.xlane.xlu0 %934
        %v936 = vsel %vm484, %v828, 0.0
        %937 = vadd.xlane.f32.xlu0 %v936
        %v938 = vpop.xlane.xlu0 %937
        %v939 = vsel %vm484, %v829, 0.0
        %940 = vadd.xlane.f32.xlu0 %v939
        %v941 = vpop.xlane.xlu0 %940
        %v942 = vsel %vm484, %v830, 0.0
        %943 = vadd.xlane.f32.xlu0 %v942
        %v944 = vpop.xlane.xlu0 %943
        %v945 = vsel %vm484, %v831, 0.0
        %946 = vadd.xlane.f32.xlu0 %v945
        %v947 = vpop.xlane.xlu0 %946
        %v948 = vsel %vm484, %v832, 0.0
        %949 = vadd.xlane.f32.xlu0 %v948
        %v950 = vpop.xlane.xlu0 %949
        %v951 = vsel %vm484, %v833, 0.0
        %952 = vadd.xlane.f32.xlu0 %v951
        %v953 = vpop.xlane.xlu0 %952
        %v954 = vsel %vm484, %v834, 0.0
        %955 = vadd.xlane.f32.xlu0 %v954
        %v956 = vpop.xlane.xlu0 %955
        %v957 = vsel %vm484, %v835, 0.0
        %958 = vadd.xlane.f32.xlu0 %v957
        %v959 = vpop.xlane.xlu0 %958
        %v960 = vsel %vm484, %v836, 0.0
        %961 = vadd.xlane.f32.xlu0 %v960
        %v962 = vpop.xlane.xlu0 %961
        %v963 = vsel %vm484, %v837, 0.0
        %964 = vadd.xlane.f32.xlu0 %v963
        %v965 = vpop.xlane.xlu0 %964
        %v966 = vsel %vm484, %v838, 0.0
        %967 = vadd.xlane.f32.xlu0 %v966
        %v968 = vpop.xlane.xlu0 %967
        %v969 = vsel %vm484, %v839, 0.0
        %970 = vadd.xlane.f32.xlu0 %v969
        %v971 = vpop.xlane.xlu0 %970
        %v972 = vsel %vm484, %v840, 0.0
        %973 = vadd.xlane.f32.xlu0 %v972
        %v974 = vpop.xlane.xlu0 %973
        %v975 = vsel %vm484, %v841, 0.0
        %976 = vadd.xlane.f32.xlu0 %v975
        %v977 = vpop.xlane.xlu0 %976
        %v978 = vsel %vm484, %v842, 0.0
        %979 = vadd.xlane.f32.xlu0 %v978
        %v980 = vpop.xlane.xlu0 %979
        %v981 = vsel %vm484, %v843, 0.0
        %982 = vadd.xlane.f32.xlu0 %v981
        %v983 = vpop.xlane.xlu0 %982
        %v984 = vsel %vm484, %v844, 0.0
        %985 = vadd.xlane.f32.xlu0 %v984
        %v986 = vpop.xlane.xlu0 %985
        %v987 = vsel %vm484, %v845, 0.0
        %988 = vadd.xlane.f32.xlu0 %v987
        %v989 = vpop.xlane.xlu0 %988
        %v990 = vsel %vm484, %v846, 0.0
        %991 = vadd.xlane.f32.xlu0 %v990
        %v992 = vpop.xlane.xlu0 %991
        %v993 = vsel %vm484, %v847, 0.0
        %994 = vadd.xlane.f32.xlu0 %v993
        %v995 = vpop.xlane.xlu0 %994
        %v996 = vsel %vm484, %v848, 0.0
        %997 = vadd.xlane.f32.xlu0 %v996
        %v998 = vpop.xlane.xlu0 %997
        %v999 = vsel %vm484, %v849, 0.0
        %1000 = vadd.xlane.f32.xlu0 %v999
        %v1001 = vpop.xlane.xlu0 %1000
        %v1002 = vsel %vm484, %v850, 0.0
        %1003 = vadd.xlane.f32.xlu0 %v1002
        %v1004 = vpop.xlane.xlu0 %1003
        %v1005 = vsel %vm484, %v851, 0.0
        %1006 = vadd.xlane.f32.xlu0 %v1005
        %v1007 = vpop.xlane.xlu0 %1006
        %v1008 = vsel %vm484, %v852, 0.0
        %1009 = vadd.xlane.f32.xlu0 %v1008
        %v1010 = vpop.xlane.xlu0 %1009
        %v1011 = vsel %vm484, %v853, 0.0
        %1012 = vadd.xlane.f32.xlu0 %v1011
        %v1013 = vpop.xlane.xlu0 %1012
        %v1014 = vsel %vm484, %v854, 0.0
        %1015 = vadd.xlane.f32.xlu0 %v1014
        %v1016 = vpop.xlane.xlu0 %1015
        %v1017 = vsel %vm484, %v855, 0.0
        %1018 = vadd.xlane.f32.xlu0 %v1017
        %v1019 = vpop.xlane.xlu0 %1018
        %v1020 = vsel %vm484, %v856, 0.0
        %1021 = vadd.xlane.f32.xlu0 %v1020
        %v1022 = vpop.xlane.xlu0 %1021
        %v1023 = vsel %vm484, %v857, 0.0
        %1024 = vadd.xlane.f32.xlu0 %v1023
        %v1025 = vpop.xlane.xlu0 %1024
        %v1026 = vsel %vm484, %v858, 0.0
        %1027 = vadd.xlane.f32.xlu0 %v1026
        %v1028 = vpop.xlane.xlu0 %1027
        %v1029 = vsel %vm484, %v859, 0.0
        %1030 = vadd.xlane.f32.xlu0 %v1029
        %v1031 = vpop.xlane.xlu0 %1030
        %v1032 = vsel %vm484, %v860, 0.0
        %1033 = vadd.xlane.f32.xlu0 %v1032
        %v1034 = vpop.xlane.xlu0 %1033
        %v1035 = vsel %vm484, %v861, 0.0
        %1036 = vadd.xlane.f32.xlu0 %v1035
        %v1037 = vpop.xlane.xlu0 %1036
        %v1038 = vsel %vm484, %v862, 0.0
        %1039 = vadd.xlane.f32.xlu0 %v1038
        %v1040 = vpop.xlane.xlu0 %1039
        %v1041 = vsel %vm484, %v863, 0.0
        %1042 = vadd.xlane.f32.xlu0 %v1041
        %v1043 = vpop.xlane.xlu0 %1042
        %v1044 = vsel %vm484, %v864, 0.0
        %1045 = vadd.xlane.f32.xlu0 %v1044
        %v1046 = vpop.xlane.xlu0 %1045
        %v1047 = vsel %vm484, %v865, 0.0
        %1048 = vadd.xlane.f32.xlu0 %v1047
        %v1049 = vpop.xlane.xlu0 %1048
        %v1050 = vsel %vm484, %v866, 0.0
        %1051 = vadd.xlane.f32.xlu0 %v1050
        %v1052 = vpop.xlane.xlu0 %1051
        %v1053 = vsel %vm484, %v867, 0.0
        %1054 = vadd.xlane.f32.xlu0 %v1053
        %v1055 = vpop.xlane.xlu0 %1054
        %v1056 = vsel %vm484, %v868, 0.0
        %1057 = vadd.xlane.f32.xlu0 %v1056
        %v1058 = vpop.xlane.xlu0 %1057
        %v1059 = vsel %vm484, %v869, 0.0
        %1060 = vadd.xlane.f32.xlu0 %v1059
        %v1061 = vpop.xlane.xlu0 %1060
        %v1062 = vmul.f32 %v872, %v677
        %v1063 = vmul.f32 %v875, %v677
        %v1064 = vmul.f32 %v878, %v677
        %v1065 = vmul.f32 %v881, %v677
        %v1066 = vmul.f32 %v884, %v677
        %v1067 = vmul.f32 %v887, %v677
        %v1068 = vmul.f32 %v890, %v677
        %v1069 = vmul.f32 %v893, %v677
        %v1070 = vmul.f32 %v896, %v677
        %v1071 = vmul.f32 %v899, %v677
        %v1072 = vmul.f32 %v902, %v677
        %v1073 = vmul.f32 %v905, %v677
        %v1074 = vmul.f32 %v908, %v677
        %v1075 = vmul.f32 %v911, %v677
        %v1076 = vmul.f32 %v914, %v677
        %v1077 = vmul.f32 %v917, %v677
        %v1078 = vmul.f32 %v920, %v677
        %v1079 = vmul.f32 %v923, %v677
        %v1080 = vmul.f32 %v926, %v677
        %v1081 = vmul.f32 %v929, %v677
        %v1082 = vmul.f32 %v932, %v677
        %v1083 = vmul.f32 %v935, %v677
        %v1084 = vmul.f32 %v938, %v677
        %v1085 = vmul.f32 %v941, %v677
        %v1086 = vmul.f32 %v944, %v677
        %v1087 = vmul.f32 %v947, %v677
        %v1088 = vmul.f32 %v950, %v677
        %v1089 = vmul.f32 %v953, %v677
        %v1090 = vmul.f32 %v956, %v677
        %v1091 = vmul.f32 %v959, %v677
        %v1092 = vmul.f32 %v962, %v677
        %v1093 = vmul.f32 %v965, %v677
        %v1094 = vmul.f32 %v968, %v677
        %v1095 = vmul.f32 %v971, %v677
        %v1096 = vmul.f32 %v974, %v677
        %v1097 = vmul.f32 %v977, %v677
        %v1098 = vmul.f32 %v980, %v677
        %v1099 = vmul.f32 %v983, %v677
        %v1100 = vmul.f32 %v986, %v677
        %v1101 = vmul.f32 %v989, %v677
        %v1102 = vmul.f32 %v992, %v677
        %v1103 = vmul.f32 %v995, %v677
        %v1104 = vmul.f32 %v998, %v677
        %v1105 = vmul.f32 %v1001, %v677
        %v1106 = vmul.f32 %v1004, %v677
        %v1107 = vmul.f32 %v1007, %v677
        %v1108 = vmul.f32 %v1010, %v677
        %v1109 = vmul.f32 %v1013, %v677
        %v1110 = vmul.f32 %v1016, %v677
        %v1111 = vmul.f32 %v1019, %v677
        %v1112 = vmul.f32 %v1022, %v677
        %v1113 = vmul.f32 %v1025, %v677
        %v1114 = vmul.f32 %v1028, %v677
        %v1115 = vmul.f32 %v1031, %v677
        %v1116 = vmul.f32 %v1034, %v677
        %v1117 = vmul.f32 %v1037, %v677
        %v1118 = vmul.f32 %v1040, %v677
        %v1119 = vmul.f32 %v1043, %v677
        %v1120 = vmul.f32 %v1046, %v677
        %v1121 = vmul.f32 %v1049, %v677
        %v1122 = vmul.f32 %v1052, %v677
        %v1123 = vmul.f32 %v1055, %v677
        %v1124 = vmul.f32 %v1058, %v677
        %v1125 = vmul.f32 %v1061, %v677
        %v1126 = vadd.f32 %v1062, 1e-06
        %v1127 = vadd.f32 %v1063, 1e-06
        %v1128 = vadd.f32 %v1064, 1e-06
        %v1129 = vadd.f32 %v1065, 1e-06
        %v1130 = vadd.f32 %v1066, 1e-06
        %v1131 = vadd.f32 %v1067, 1e-06
        %v1132 = vadd.f32 %v1068, 1e-06
        %v1133 = vadd.f32 %v1069, 1e-06
        %v1134 = vadd.f32 %v1070, 1e-06
        %v1135 = vadd.f32 %v1071, 1e-06
        %v1136 = vadd.f32 %v1072, 1e-06
        %v1137 = vadd.f32 %v1073, 1e-06
        %v1138 = vadd.f32 %v1074, 1e-06
        %v1139 = vadd.f32 %v1075, 1e-06
        %v1140 = vadd.f32 %v1076, 1e-06
        %v1141 = vadd.f32 %v1077, 1e-06
        %v1142 = vadd.f32 %v1078, 1e-06
        %v1143 = vadd.f32 %v1079, 1e-06
        %v1144 = vadd.f32 %v1080, 1e-06
        %v1145 = vadd.f32 %v1081, 1e-06
        %v1146 = vadd.f32 %v1082, 1e-06
        %v1147 = vadd.f32 %v1083, 1e-06
        %v1148 = vadd.f32 %v1084, 1e-06
        %v1149 = vadd.f32 %v1085, 1e-06
        %v1150 = vadd.f32 %v1086, 1e-06
        %v1151 = vadd.f32 %v1087, 1e-06
        %v1152 = vadd.f32 %v1088, 1e-06
        %v1153 = vadd.f32 %v1089, 1e-06
        %v1154 = vadd.f32 %v1090, 1e-06
        %v1155 = vadd.f32 %v1091, 1e-06
        %v1156 = vadd.f32 %v1092, 1e-06
        %v1157 = vadd.f32 %v1093, 1e-06
        %v1158 = vadd.f32 %v1094, 1e-06
        %v1159 = vadd.f32 %v1095, 1e-06
        %v1160 = vadd.f32 %v1096, 1e-06
        %v1161 = vadd.f32 %v1097, 1e-06
        %v1162 = vadd.f32 %v1098, 1e-06
        %v1163 = vadd.f32 %v1099, 1e-06
        %v1164 = vadd.f32 %v1100, 1e-06
        %v1165 = vadd.f32 %v1101, 1e-06
        %v1166 = vadd.f32 %v1102, 1e-06
        %v1167 = vadd.f32 %v1103, 1e-06
        %v1168 = vadd.f32 %v1104, 1e-06
        %v1169 = vadd.f32 %v1105, 1e-06
        %v1170 = vadd.f32 %v1106, 1e-06
        %v1171 = vadd.f32 %v1107, 1e-06
        %v1172 = vadd.f32 %v1108, 1e-06
        %v1173 = vadd.f32 %v1109, 1e-06
        %v1174 = vadd.f32 %v1110, 1e-06
        %v1175 = vadd.f32 %v1111, 1e-06
        %v1176 = vadd.f32 %v1112, 1e-06
        %v1177 = vadd.f32 %v1113, 1e-06
        %v1178 = vadd.f32 %v1114, 1e-06
        %v1179 = vadd.f32 %v1115, 1e-06
        %v1180 = vadd.f32 %v1116, 1e-06
        %v1181 = vadd.f32 %v1117, 1e-06
        %v1182 = vadd.f32 %v1118, 1e-06
        %v1183 = vadd.f32 %v1119, 1e-06
        %v1184 = vadd.f32 %v1120, 1e-06
        %v1185 = vadd.f32 %v1121, 1e-06
        %v1186 = vadd.f32 %v1122, 1e-06
        %v1187 = vadd.f32 %v1123, 1e-06
        %v1188 = vadd.f32 %v1124, 1e-06
        %v1189 = vadd.f32 %v1125, 1e-06
        %v1190 = vrsqrt.pop %v1126
        %v1191 = vrsqrt.pop %v1127
        %v1192 = vrsqrt.pop %v1128
        %v1193 = vrsqrt.pop %v1129
        %v1194 = vrsqrt.pop %v1130
        %v1195 = vrsqrt.pop %v1131
        %v1196 = vrsqrt.pop %v1132
        %v1197 = vrsqrt.pop %v1133
        %v1198 = vrsqrt.pop %v1134
        %v1199 = vrsqrt.pop %v1135
        %v1200 = vrsqrt.pop %v1136
        %v1201 = vrsqrt.pop %v1137
        %v1202 = vrsqrt.pop %v1138
        %v1203 = vrsqrt.pop %v1139
        %v1204 = vrsqrt.pop %v1140
        %v1205 = vrsqrt.pop %v1141
        %v1206 = vrsqrt.pop %v1142
        %v1207 = vrsqrt.pop %v1143
        %v1208 = vrsqrt.pop %v1144
        %v1209 = vrsqrt.pop %v1145
        %v1210 = vrsqrt.pop %v1146
        %v1211 = vrsqrt.pop %v1147
        %v1212 = vrsqrt.pop %v1148
        %v1213 = vrsqrt.pop %v1149
        %v1214 = vrsqrt.pop %v1150
        %v1215 = vrsqrt.pop %v1151
        %v1216 = vrsqrt.pop %v1152
        %v1217 = vrsqrt.pop %v1153
        %v1218 = vrsqrt.pop %v1154
        %v1219 = vrsqrt.pop %v1155
        %v1220 = vrsqrt.pop %v1156
        %v1221 = vrsqrt.pop %v1157
        %v1222 = vrsqrt.pop %v1158
        %v1223 = vrsqrt.pop %v1159
        %v1224 = vrsqrt.pop %v1160
        %v1225 = vrsqrt.pop %v1161
        %v1226 = vrsqrt.pop %v1162
        %v1227 = vrsqrt.pop %v1163
        %v1228 = vrsqrt.pop %v1164
        %v1229 = vrsqrt.pop %v1165
        %v1230 = vrsqrt.pop %v1166
        %v1231 = vrsqrt.pop %v1167
        %v1232 = vrsqrt.pop %v1168
        %v1233 = vrsqrt.pop %v1169
        %v1234 = vrsqrt.pop %v1170
        %v1235 = vrsqrt.pop %v1171
        %v1236 = vrsqrt.pop %v1172
        %v1237 = vrsqrt.pop %v1173
        %v1238 = vrsqrt.pop %v1174
        %v1239 = vrsqrt.pop %v1175
        %v1240 = vrsqrt.pop %v1176
        %v1241 = vrsqrt.pop %v1177
        %v1242 = vrsqrt.pop %v1178
        %v1243 = vrsqrt.pop %v1179
        %v1244 = vrsqrt.pop %v1180
        %v1245 = vrsqrt.pop %v1181
        %v1246 = vrsqrt.pop %v1182
        %v1247 = vrsqrt.pop %v1183
        %v1248 = vrsqrt.pop %v1184
        %v1249 = vrsqrt.pop %v1185
        %v1250 = vrsqrt.pop %v1186
        %v1251 = vrsqrt.pop %v1187
        %v1252 = vrsqrt.pop %v1188
        %v1253 = vrsqrt.pop %v1189
        %v1254 = vmul.f32 %v742, %v1190
        %v1255 = vmul.f32 %v743, %v1191
        %v1256 = vmul.f32 %v744, %v1192
        %v1257 = vmul.f32 %v745, %v1193
        %v1258 = vmul.f32 %v746, %v1194
        %v1259 = vmul.f32 %v747, %v1195
        %v1260 = vmul.f32 %v748, %v1196
        %v1261 = vmul.f32 %v749, %v1197
        %v1262 = vmul.f32 %v750, %v1198
        %v1263 = vmul.f32 %v751, %v1199
        %v1264 = vmul.f32 %v752, %v1200
        %v1265 = vmul.f32 %v753, %v1201
        %v1266 = vmul.f32 %v754, %v1202
        %v1267 = vmul.f32 %v755, %v1203
        %v1268 = vmul.f32 %v756, %v1204
        %v1269 = vmul.f32 %v757, %v1205
        %v1270 = vmul.f32 %v758, %v1206
        %v1271 = vmul.f32 %v759, %v1207
        %v1272 = vmul.f32 %v760, %v1208
        %v1273 = vmul.f32 %v761, %v1209
        %v1274 = vmul.f32 %v762, %v1210
        %v1275 = vmul.f32 %v763, %v1211
        %v1276 = vmul.f32 %v764, %v1212
        %v1277 = vmul.f32 %v765, %v1213
        %v1278 = vmul.f32 %v766, %v1214
        %v1279 = vmul.f32 %v767, %v1215
        %v1280 = vmul.f32 %v768, %v1216
        %v1281 = vmul.f32 %v769, %v1217
        %v1282 = vmul.f32 %v770, %v1218
        %v1283 = vmul.f32 %v771, %v1219
        %v1284 = vmul.f32 %v772, %v1220
        %v1285 = vmul.f32 %v773, %v1221
        %v1286 = vmul.f32 %v774, %v1222
        %v1287 = vmul.f32 %v775, %v1223
        %v1288 = vmul.f32 %v776, %v1224
        %v1289 = vmul.f32 %v777, %v1225
        %v1290 = vmul.f32 %v778, %v1226
        %v1291 = vmul.f32 %v779, %v1227
        %v1292 = vmul.f32 %v780, %v1228
        %v1293 = vmul.f32 %v781, %v1229
        %v1294 = vmul.f32 %v782, %v1230
        %v1295 = vmul.f32 %v783, %v1231
        %v1296 = vmul.f32 %v784, %v1232
        %v1297 = vmul.f32 %v785, %v1233
        %v1298 = vmul.f32 %v786, %v1234
        %v1299 = vmul.f32 %v787, %v1235
        %v1300 = vmul.f32 %v788, %v1236
        %v1301 = vmul.f32 %v789, %v1237
        %v1302 = vmul.f32 %v790, %v1238
        %v1303 = vmul.f32 %v791, %v1239
        %v1304 = vmul.f32 %v792, %v1240
        %v1305 = vmul.f32 %v793, %v1241
        %v1306 = vmul.f32 %v794, %v1242
        %v1307 = vmul.f32 %v795, %v1243
        %v1308 = vmul.f32 %v796, %v1244
        %v1309 = vmul.f32 %v797, %v1245
        %v1310 = vmul.f32 %v798, %v1246
        %v1311 = vmul.f32 %v799, %v1247
        %v1312 = vmul.f32 %v800, %v1248
        %v1313 = vmul.f32 %v801, %v1249
        %v1314 = vmul.f32 %v802, %v1250
        %v1315 = vmul.f32 %v803, %v1251
        %v1316 = vmul.f32 %v804, %v1252
        %v1317 = vmul.f32 %v805, %v1253
        %v1319 = vlaneseq
        %v1320 = vshrl.u32 %v1319, 7
        %v1321 = vsub.s32 0, %v1320
        %v1322 = vrot.slane %v482, %v1321
        %v1324 = vmul.f32 %v1254, %v1322
        %v1325 = vmul.f32 %v1255, %v1322
        %v1326 = vmul.f32 %v1256, %v1322
        %v1327 = vmul.f32 %v1257, %v1322
        %v1328 = vmul.f32 %v1258, %v1322
        %v1329 = vmul.f32 %v1259, %v1322
        %v1330 = vmul.f32 %v1260, %v1322
        %v1331 = vmul.f32 %v1261, %v1322
        %v1332 = vmul.f32 %v1262, %v1322
        %v1333 = vmul.f32 %v1263, %v1322
        %v1334 = vmul.f32 %v1264, %v1322
        %v1335 = vmul.f32 %v1265, %v1322
        %v1336 = vmul.f32 %v1266, %v1322
        %v1337 = vmul.f32 %v1267, %v1322
        %v1338 = vmul.f32 %v1268, %v1322
        %v1339 = vmul.f32 %v1269, %v1322
        %v1340 = vmul.f32 %v1270, %v1322
        %v1341 = vmul.f32 %v1271, %v1322
        %v1342 = vmul.f32 %v1272, %v1322
        %v1343 = vmul.f32 %v1273, %v1322
        %v1344 = vmul.f32 %v1274, %v1322
        %v1345 = vmul.f32 %v1275, %v1322
        %v1346 = vmul.f32 %v1276, %v1322
        %v1347 = vmul.f32 %v1277, %v1322
        %v1348 = vmul.f32 %v1278, %v1322
        %v1349 = vmul.f32 %v1279, %v1322
        %v1350 = vmul.f32 %v1280, %v1322
        %v1351 = vmul.f32 %v1281, %v1322
        %v1352 = vmul.f32 %v1282, %v1322
        %v1353 = vmul.f32 %v1283, %v1322
        %v1354 = vmul.f32 %v1284, %v1322
        %v1355 = vmul.f32 %v1285, %v1322
        %v1356 = vmul.f32 %v1286, %v1322
        %v1357 = vmul.f32 %v1287, %v1322
        %v1358 = vmul.f32 %v1288, %v1322
        %v1359 = vmul.f32 %v1289, %v1322
        %v1360 = vmul.f32 %v1290, %v1322
        %v1361 = vmul.f32 %v1291, %v1322
        %v1362 = vmul.f32 %v1292, %v1322
        %v1363 = vmul.f32 %v1293, %v1322
        %v1364 = vmul.f32 %v1294, %v1322
        %v1365 = vmul.f32 %v1295, %v1322
        %v1366 = vmul.f32 %v1296, %v1322
        %v1367 = vmul.f32 %v1297, %v1322
        %v1368 = vmul.f32 %v1298, %v1322
        %v1369 = vmul.f32 %v1299, %v1322
        %v1370 = vmul.f32 %v1300, %v1322
        %v1371 = vmul.f32 %v1301, %v1322
        %v1372 = vmul.f32 %v1302, %v1322
        %v1373 = vmul.f32 %v1303, %v1322
        %v1374 = vmul.f32 %v1304, %v1322
        %v1375 = vmul.f32 %v1305, %v1322
        %v1376 = vmul.f32 %v1306, %v1322
        %v1377 = vmul.f32 %v1307, %v1322
        %v1378 = vmul.f32 %v1308, %v1322
        %v1379 = vmul.f32 %v1309, %v1322
        %v1380 = vmul.f32 %v1310, %v1322
        %v1381 = vmul.f32 %v1311, %v1322
        %v1382 = vmul.f32 %v1312, %v1322
        %v1383 = vmul.f32 %v1313, %v1322
        %v1384 = vmul.f32 %v1314, %v1322
        %v1385 = vmul.f32 %v1315, %v1322
        %v1386 = vmul.f32 %v1316, %v1322
        %v1387 = vmul.f32 %v1317, %v1322
        %v1389 = vlaneseq
        %v1390 = vshrl.u32 %v1389, 7
        %v1391 = vsub.s32 0, %v1390
        %v1392 = vrot.slane %v483, %v1391
        %v1394 = vadd.f32 %v1324, %v1392
        %v1395 = vadd.f32 %v1325, %v1392
        %v1396 = vadd.f32 %v1326, %v1392
        %v1397 = vadd.f32 %v1327, %v1392
        %v1398 = vadd.f32 %v1328, %v1392
        %v1399 = vadd.f32 %v1329, %v1392
        %v1400 = vadd.f32 %v1330, %v1392
        %v1401 = vadd.f32 %v1331, %v1392
        %v1402 = vadd.f32 %v1332, %v1392
        %v1403 = vadd.f32 %v1333, %v1392
        %v1404 = vadd.f32 %v1334, %v1392
        %v1405 = vadd.f32 %v1335, %v1392
        %v1406 = vadd.f32 %v1336, %v1392
        %v1407 = vadd.f32 %v1337, %v1392
        %v1408 = vadd.f32 %v1338, %v1392
        %v1409 = vadd.f32 %v1339, %v1392
        %v1410 = vadd.f32 %v1340, %v1392
        %v1411 = vadd.f32 %v1341, %v1392
        %v1412 = vadd.f32 %v1342, %v1392
        %v1413 = vadd.f32 %v1343, %v1392
        %v1414 = vadd.f32 %v1344, %v1392
        %v1415 = vadd.f32 %v1345, %v1392
        %v1416 = vadd.f32 %v1346, %v1392
        %v1417 = vadd.f32 %v1347, %v1392
        %v1418 = vadd.f32 %v1348, %v1392
        %v1419 = vadd.f32 %v1349, %v1392
        %v1420 = vadd.f32 %v1350, %v1392
        %v1421 = vadd.f32 %v1351, %v1392
        %v1422 = vadd.f32 %v1352, %v1392
        %v1423 = vadd.f32 %v1353, %v1392
        %v1424 = vadd.f32 %v1354, %v1392
        %v1425 = vadd.f32 %v1355, %v1392
        %v1426 = vadd.f32 %v1356, %v1392
        %v1427 = vadd.f32 %v1357, %v1392
        %v1428 = vadd.f32 %v1358, %v1392
        %v1429 = vadd.f32 %v1359, %v1392
        %v1430 = vadd.f32 %v1360, %v1392
        %v1431 = vadd.f32 %v1361, %v1392
        %v1432 = vadd.f32 %v1362, %v1392
        %v1433 = vadd.f32 %v1363, %v1392
        %v1434 = vadd.f32 %v1364, %v1392
        %v1435 = vadd.f32 %v1365, %v1392
        %v1436 = vadd.f32 %v1366, %v1392
        %v1437 = vadd.f32 %v1367, %v1392
        %v1438 = vadd.f32 %v1368, %v1392
        %v1439 = vadd.f32 %v1369, %v1392
        %v1440 = vadd.f32 %v1370, %v1392
        %v1441 = vadd.f32 %v1371, %v1392
        %v1442 = vadd.f32 %v1372, %v1392
        %v1443 = vadd.f32 %v1373, %v1392
        %v1444 = vadd.f32 %v1374, %v1392
        %v1445 = vadd.f32 %v1375, %v1392
        %v1446 = vadd.f32 %v1376, %v1392
        %v1447 = vadd.f32 %v1377, %v1392
        %v1448 = vadd.f32 %v1378, %v1392
        %v1449 = vadd.f32 %v1379, %v1392
        %v1450 = vadd.f32 %v1380, %v1392
        %v1451 = vadd.f32 %v1381, %v1392
        %v1452 = vadd.f32 %v1382, %v1392
        %v1453 = vadd.f32 %v1383, %v1392
        %v1454 = vadd.f32 %v1384, %v1392
        %v1455 = vadd.f32 %v1385, %v1392
        %v1456 = vadd.f32 %v1386, %v1392
        %v1457 = vadd.f32 %v1387, %v1392
        %v1458 = vpack.c.bf16 %v1395, %v1394
        %v1459 = vpack.c.bf16 %v1397, %v1396
        %v1460 = vpack.c.bf16 %v1399, %v1398
        %v1461 = vpack.c.bf16 %v1401, %v1400
        %v1462 = vpack.c.bf16 %v1403, %v1402
        %v1463 = vpack.c.bf16 %v1405, %v1404
        %v1464 = vpack.c.bf16 %v1407, %v1406
        %v1465 = vpack.c.bf16 %v1409, %v1408
        %v1466 = vpack.c.bf16 %v1411, %v1410
        %v1467 = vpack.c.bf16 %v1413, %v1412
        %v1468 = vpack.c.bf16 %v1415, %v1414
        %v1469 = vpack.c.bf16 %v1417, %v1416
        %v1470 = vpack.c.bf16 %v1419, %v1418
        %v1471 = vpack.c.bf16 %v1421, %v1420
        %v1472 = vpack.c.bf16 %v1423, %v1422
        %v1473 = vpack.c.bf16 %v1425, %v1424
        %v1474 = vpack.c.bf16 %v1427, %v1426
        %v1475 = vpack.c.bf16 %v1429, %v1428
        %v1476 = vpack.c.bf16 %v1431, %v1430
        %v1477 = vpack.c.bf16 %v1433, %v1432
        %v1478 = vpack.c.bf16 %v1435, %v1434
        %v1479 = vpack.c.bf16 %v1437, %v1436
        %v1480 = vpack.c.bf16 %v1439, %v1438
        %v1481 = vpack.c.bf16 %v1441, %v1440
        %v1482 = vpack.c.bf16 %v1443, %v1442
        %v1483 = vpack.c.bf16 %v1445, %v1444
        %v1484 = vpack.c.bf16 %v1447, %v1446
        %v1485 = vpack.c.bf16 %v1449, %v1448
        %v1486 = vpack.c.bf16 %v1451, %v1450
        %v1487 = vpack.c.bf16 %v1453, %v1452
        %v1488 = vpack.c.bf16 %v1455, %v1454
        %v1489 = vpack.c.bf16 %v1457, %v1456
        %v1490 = vld [vmem:[#allocation8] sm:$0xf]
        %v1491 = vld [vmem:[#allocation8 + $0x4] sm:$0xf]
        %v1492 = vld [vmem:[#allocation8 + $0x8] sm:$0xf]
        %v1493 = vld [vmem:[#allocation8 + $0xc] sm:$0xf]
        %v1494 = vld [vmem:[#allocation10] sm:$0x1]
        %v1496 = vlaneseq
        %v1497 = vshrl.u32 %v1496, 7
        %v1498 = vsub.s32 0, %v1497
        %v1499 = vrot.slane %v1494, %v1498
        %v1505 = vunpack.c.l.b16 %v1490
        %v1506 = vunpack.c.l.b16 %v1491
        %v1507 = vunpack.c.l.b16 %v1492
        %v1508 = vunpack.c.l.b16 %v1493
        %v1509 = vpack.c.b16 %v1506, %v1505
        %v1510 = vpack.c.b16 %v1508, %v1507
        %v1514 = vsel %vm484, %v1458, 0
        %v1517 = vsel %vm484, %v1459, 0
        %v1520 = vsel %vm484, %v1460, 0
        %v1523 = vsel %vm484, %v1461, 0
        %v1526 = vsel %vm484, %v1462, 0
        %v1529 = vsel %vm484, %v1463, 0
        %v1532 = vsel %vm484, %v1464, 0
        %v1535 = vsel %vm484, %v1465, 0
        %v1538 = vsel %vm484, %v1466, 0
        %v1541 = vsel %vm484, %v1467, 0
        %v1544 = vsel %vm484, %v1468, 0
        %v1547 = vsel %vm484, %v1469, 0
        %v1550 = vsel %vm484, %v1470, 0
        %v1553 = vsel %vm484, %v1471, 0
        %v1556 = vsel %vm484, %v1472, 0
        %v1559 = vsel %vm484, %v1473, 0
        %v1562 = vsel %vm484, %v1474, 0
        %v1565 = vsel %vm484, %v1475, 0
        %v1568 = vsel %vm484, %v1476, 0
        %v1571 = vsel %vm484, %v1477, 0
        %v1574 = vsel %vm484, %v1478, 0
        %v1577 = vsel %vm484, %v1479, 0
        %v1580 = vsel %vm484, %v1480, 0
        %v1583 = vsel %vm484, %v1481, 0
        %v1586 = vsel %vm484, %v1482, 0
        %v1589 = vsel %vm484, %v1483, 0
        %v1592 = vsel %vm484, %v1484, 0
        %v1595 = vsel %vm484, %v1485, 0
        %v1598 = vsel %vm484, %v1486, 0
        %v1601 = vsel %vm484, %v1487, 0
        %v1604 = vsel %vm484, %v1488, 0
        %v1607 = vsel %vm484, %v1489, 0
        %1609 = vmatprep.subr.bf16.mxu0 0
        %1610 = vmatpush1.bf16.msra.mxu0 %v1509
        %1611 = vmatprep.subr.bf16.mxu0 0
        %1612 = vmatpush1.bf16.msra.mxu0 %v1510
        %1613 = vmatprep.subr.bf16.mxu0 0
        %1614 = vmatpush1.bf16.msra.mxu0 0
        %1615 = vmatprep.subr.bf16.mxu0 0
        %1616 = vmatpush1.bf16.msra.mxu0 0
        %1617 = vmatprep.subr.bf16.mxu0 0
        %1618 = vmatpush1.bf16.msra.mxu0 0
        %1619 = vmatprep.subr.bf16.mxu0 0
        %1620 = vmatpush1.bf16.msra.mxu0 0
        %1621 = vmatprep.subr.bf16.mxu0 0
        %1622 = vmatpush1.bf16.msra.mxu0 0
        %1623 = vmatprep.subr.bf16.mxu0 0
        %1624 = vmatpush1.bf16.msra.mxu0 0
        %1625 = vmatprep.subr.bf16.mxu0 0
        %1626 = vmatpush1.bf16.msra.mxu0 0
        %1627 = vmatprep.subr.bf16.mxu0 0
        %1628 = vmatpush1.bf16.msra.mxu0 0
        %1629 = vmatprep.subr.bf16.mxu0 0
        %1630 = vmatpush1.bf16.msra.mxu0 0
        %1631 = vmatprep.subr.bf16.mxu0 0
        %1632 = vmatpush1.bf16.msra.mxu0 0
        %1633 = vmatprep.subr.bf16.mxu0 0
        %1634 = vmatpush1.bf16.msra.mxu0 0
        %1635 = vmatprep.subr.bf16.mxu0 0
        %1636 = vmatpush1.bf16.msra.mxu0 0
        %1637 = vmatprep.subr.bf16.mxu0 0
        %1638 = vmatpush1.bf16.msra.mxu0 0
        %1639 = vmatprep.subr.bf16.mxu0 0
        %1640 = vmatpush1.bf16.msra.mxu0 0
        %1641 = vmatprep.mubr.bf16.mxu0 0
        %1642 = vmatmul.mubr.bf16.gmra.mrb[0].mxu0 %v1514
        %v1643 = vpop.f32.mrb[0].mxu0
        %v1644 = vadd.f32 %v1499, %v1643
        %v1645 = vpop.f32.mrb[0].mxu0
        %v1646 = vpop.f32.mrb[0].mxu0
        %v1647 = vadd.f32 %v1499, %v1646
        %v1648 = vpop.f32.mrb[0].mxu0
        %1649 = vmatprep.mubr.bf16.mxu0 0
        %1650 = vmatmul.mubr.bf16.gmra.mrb[0].mxu0 %v1517
        %v1651 = vpop.f32.mrb[0].mxu0
        %v1652 = vadd.f32 %v1499, %v1651
        %v1653 = vpop.f32.mrb[0].mxu0
        %v1654 = vpop.f32.mrb[0].mxu0
        %v1655 = vadd.f32 %v1499, %v1654
        %v1656 = vpop.f32.mrb[0].mxu0
        %1657 = vmatprep.mubr.bf16.mxu0 0
        %1658 = vmatmul.mubr.bf16.gmra.mrb[0].mxu0 %v1520
        %v1659 = vpop.f32.mrb[0].mxu0
        %v1660 = vadd.f32 %v1499, %v1659
        %v1661 = vpop.f32.mrb[0].mxu0
        %v1662 = vpop.f32.mrb[0].mxu0
        %v1663 = vadd.f32 %v1499, %v1662
        %v1664 = vpop.f32.mrb[0].mxu0
        %1665 = vmatprep.mubr.bf16.mxu0 0
        %1666 = vmatmul.mubr.bf16.gmra.mrb[0].mxu0 %v1523
        %v1667 = vpop.f32.mrb[0].mxu0
        %v1668 = vadd.f32 %v1499, %v1667
        %v1669 = vpop.f32.mrb[0].mxu0
        %v1670 = vpop.f32.mrb[0].mxu0
        %v1671 = vadd.f32 %v1499, %v1670
        %v1672 = vpop.f32.mrb[0].mxu0
        %1673 = vmatprep.mubr.bf16.mxu0 0
        %1674 = vmatmul.mubr.bf16.gmra.mrb[0].mxu0 %v1526
        %v1675 = vpop.f32.mrb[0].mxu0
        %v1676 = vadd.f32 %v1499, %v1675
        %v1677 = vpop.f32.mrb[0].mxu0
        %v1678 = vpop.f32.mrb[0].mxu0
        %v1679 = vadd.f32 %v1499, %v1678
        %v1680 = vpop.f32.mrb[0].mxu0
        %1681 = vmatprep.mubr.bf16.mxu0 0
        %1682 = vmatmul.mubr.bf16.gmra.mrb[0].mxu0 %v1529
        %v1683 = vpop.f32.mrb[0].mxu0
        %v1684 = vadd.f32 %v1499, %v1683
        %v1685 = vpop.f32.mrb[0].mxu0
        %v1686 = vpop.f32.mrb[0].mxu0
        %v1687 = vadd.f32 %v1499, %v1686
        %v1688 = vpop.f32.mrb[0].mxu0
        %1689 = vmatprep.mubr.bf16.mxu0 0
        %1690 = vmatmul.mubr.bf16.gmra.mrb[0].mxu0 %v1532
        %v1691 = vpop.f32.mrb[0].mxu0
        %v1692 = vadd.f32 %v1499, %v1691
        %v1693 = vpop.f32.mrb[0].mxu0
        %v1694 = vpop.f32.mrb[0].mxu0
        %v1695 = vadd.f32 %v1499, %v1694
        %v1696 = vpop.f32.mrb[0].mxu0
        %1697 = vmatprep.mubr.bf16.mxu0 0
        %1698 = vmatmul.mubr.bf16.gmra.mrb[0].mxu0 %v1535
        %v1699 = vpop.f32.mrb[0].mxu0
        %v1700 = vadd.f32 %v1499, %v1699
        %v1701 = vpop.f32.mrb[0].mxu0
        %v1702 = vpop.f32.mrb[0].mxu0
        %v1703 = vadd.f32 %v1499, %v1702
        %v1704 = vpop.f32.mrb[0].mxu0
        %1705 = vmatprep.mubr.bf16.mxu0 0
        %1706 = vmatmul.mubr.bf16.gmra.mrb[0].mxu0 %v1538
        %v1707 = vpop.f32.mrb[0].mxu0
        %v1708 = vadd.f32 %v1499, %v1707
        %v1709 = vpop.f32.mrb[0].mxu0
        %v1710 = vpop.f32.mrb[0].mxu0
        %v1711 = vadd.f32 %v1499, %v1710
        %v1712 = vpop.f32.mrb[0].mxu0
        %1713 = vmatprep.mubr.bf16.mxu0 0
        %1714 = vmatmul.mubr.bf16.gmra.mrb[0].mxu0 %v1541
        %v1715 = vpop.f32.mrb[0].mxu0
        %v1716 = vadd.f32 %v1499, %v1715
        %v1717 = vpop.f32.mrb[0].mxu0
        %v1718 = vpop.f32.mrb[0].mxu0
        %v1719 = vadd.f32 %v1499, %v1718
        %v1720 = vpop.f32.mrb[0].mxu0
        %1721 = vmatprep.mubr.bf16.mxu0 0
        %1722 = vmatmul.mubr.bf16.gmra.mrb[0].mxu0 %v1544
        %v1723 = vpop.f32.mrb[0].mxu0
        %v1724 = vadd.f32 %v1499, %v1723
        %v1725 = vpop.f32.mrb[0].mxu0
        %v1726 = vpop.f32.mrb[0].mxu0
        %v1727 = vadd.f32 %v1499, %v1726
        %v1728 = vpop.f32.mrb[0].mxu0
        %1729 = vmatprep.mubr.bf16.mxu0 0
        %1730 = vmatmul.mubr.bf16.gmra.mrb[0].mxu0 %v1547
        %v1731 = vpop.f32.mrb[0].mxu0
        %v1732 = vadd.f32 %v1499, %v1731
        %v1733 = vpop.f32.mrb[0].mxu0
        %v1734 = vpop.f32.mrb[0].mxu0
        %v1735 = vadd.f32 %v1499, %v1734
        %v1736 = vpop.f32.mrb[0].mxu0
        %1737 = vmatprep.mubr.bf16.mxu0 0
        %1738 = vmatmul.mubr.bf16.gmra.mrb[0].mxu0 %v1550
        %v1739 = vpop.f32.mrb[0].mxu0
        %v1740 = vadd.f32 %v1499, %v1739
        %v1741 = vpop.f32.mrb[0].mxu0
        %v1742 = vpop.f32.mrb[0].mxu0
        %v1743 = vadd.f32 %v1499, %v1742
        %v1744 = vpop.f32.mrb[0].mxu0
        %1745 = vmatprep.mubr.bf16.mxu0 0
        %1746 = vmatmul.mubr.bf16.gmra.mrb[0].mxu0 %v1553
        %v1747 = vpop.f32.mrb[0].mxu0
        %v1748 = vadd.f32 %v1499, %v1747
        %v1749 = vpop.f32.mrb[0].mxu0
        %v1750 = vpop.f32.mrb[0].mxu0
        %v1751 = vadd.f32 %v1499, %v1750
        %v1752 = vpop.f32.mrb[0].mxu0
        %1753 = vmatprep.mubr.bf16.mxu0 0
        %1754 = vmatmul.mubr.bf16.gmra.mrb[0].mxu0 %v1556
        %v1755 = vpop.f32.mrb[0].mxu0
        %v1756 = vadd.f32 %v1499, %v1755
        %v1757 = vpop.f32.mrb[0].mxu0
        %v1758 = vpop.f32.mrb[0].mxu0
        %v1759 = vadd.f32 %v1499, %v1758
        %v1760 = vpop.f32.mrb[0].mxu0
        %1761 = vmatprep.mubr.bf16.mxu0 0
        %1762 = vmatmul.mubr.bf16.gmra.mrb[0].mxu0 %v1559
        %v1763 = vpop.f32.mrb[0].mxu0
        %v1764 = vadd.f32 %v1499, %v1763
        %v1765 = vpop.f32.mrb[0].mxu0
        %v1766 = vpop.f32.mrb[0].mxu0
        %v1767 = vadd.f32 %v1499, %v1766
        %v1768 = vpop.f32.mrb[0].mxu0
        %1769 = vmatprep.mubr.bf16.mxu0 0
        %1770 = vmatmul.mubr.bf16.gmra.mrb[0].mxu0 %v1562
        %v1771 = vpop.f32.mrb[0].mxu0
        %v1772 = vadd.f32 %v1499, %v1771
        %v1773 = vpop.f32.mrb[0].mxu0
        %v1774 = vpop.f32.mrb[0].mxu0
        %v1775 = vadd.f32 %v1499, %v1774
        %v1776 = vpop.f32.mrb[0].mxu0
        %1777 = vmatprep.mubr.bf16.mxu0 0
        %1778 = vmatmul.mubr.bf16.gmra.mrb[0].mxu0 %v1565
        %v1779 = vpop.f32.mrb[0].mxu0
        %v1780 = vadd.f32 %v1499, %v1779
        %v1781 = vpop.f32.mrb[0].mxu0
        %v1782 = vpop.f32.mrb[0].mxu0
        %v1783 = vadd.f32 %v1499, %v1782
        %v1784 = vpop.f32.mrb[0].mxu0
        %1785 = vmatprep.mubr.bf16.mxu0 0
        %1786 = vmatmul.mubr.bf16.gmra.mrb[0].mxu0 %v1568
        %v1787 = vpop.f32.mrb[0].mxu0
        %v1788 = vadd.f32 %v1499, %v1787
        %v1789 = vpop.f32.mrb[0].mxu0
        %v1790 = vpop.f32.mrb[0].mxu0
        %v1791 = vadd.f32 %v1499, %v1790
        %v1792 = vpop.f32.mrb[0].mxu0
        %1793 = vmatprep.mubr.bf16.mxu0 0
        %1794 = vmatmul.mubr.bf16.gmra.mrb[0].mxu0 %v1571
        %v1795 = vpop.f32.mrb[0].mxu0
        %v1796 = vadd.f32 %v1499, %v1795
        %v1797 = vpop.f32.mrb[0].mxu0
        %v1798 = vpop.f32.mrb[0].mxu0
        %v1799 = vadd.f32 %v1499, %v1798
        %v1800 = vpop.f32.mrb[0].mxu0
        %1801 = vmatprep.mubr.bf16.mxu0 0
        %1802 = vmatmul.mubr.bf16.gmra.mrb[0].mxu0 %v1574
        %v1803 = vpop.f32.mrb[0].mxu0
        %v1804 = vadd.f32 %v1499, %v1803
        %v1805 = vpop.f32.mrb[0].mxu0
        %v1806 = vpop.f32.mrb[0].mxu0
        %v1807 = vadd.f32 %v1499, %v1806
        %v1808 = vpop.f32.mrb[0].mxu0
        %1809 = vmatprep.mubr.bf16.mxu0 0
        %1810 = vmatmul.mubr.bf16.gmra.mrb[0].mxu0 %v1577
        %v1811 = vpop.f32.mrb[0].mxu0
        %v1812 = vadd.f32 %v1499, %v1811
        %v1813 = vpop.f32.mrb[0].mxu0
        %v1814 = vpop.f32.mrb[0].mxu0
        %v1815 = vadd.f32 %v1499, %v1814
        %v1816 = vpop.f32.mrb[0].mxu0
        %1817 = vmatprep.mubr.bf16.mxu0 0
        %1818 = vmatmul.mubr.bf16.gmra.mrb[0].mxu0 %v1580
        %v1819 = vpop.f32.mrb[0].mxu0
        %v1820 = vadd.f32 %v1499, %v1819
        %v1821 = vpop.f32.mrb[0].mxu0
        %v1822 = vpop.f32.mrb[0].mxu0
        %v1823 = vadd.f32 %v1499, %v1822
        %v1824 = vpop.f32.mrb[0].mxu0
        %1825 = vmatprep.mubr.bf16.mxu0 0
        %1826 = vmatmul.mubr.bf16.gmra.mrb[0].mxu0 %v1583
        %v1827 = vpop.f32.mrb[0].mxu0
        %v1828 = vadd.f32 %v1499, %v1827
        %v1829 = vpop.f32.mrb[0].mxu0
        %v1830 = vpop.f32.mrb[0].mxu0
        %v1831 = vadd.f32 %v1499, %v1830
        %v1832 = vpop.f32.mrb[0].mxu0
        %1833 = vmatprep.mubr.bf16.mxu0 0
        %1834 = vmatmul.mubr.bf16.gmra.mrb[0].mxu0 %v1586
        %v1835 = vpop.f32.mrb[0].mxu0
        %v1836 = vadd.f32 %v1499, %v1835
        %v1837 = vpop.f32.mrb[0].mxu0
        %v1838 = vpop.f32.mrb[0].mxu0
        %v1839 = vadd.f32 %v1499, %v1838
        %v1840 = vpop.f32.mrb[0].mxu0
        %1841 = vmatprep.mubr.bf16.mxu0 0
        %1842 = vmatmul.mubr.bf16.gmra.mrb[0].mxu0 %v1589
        %v1843 = vpop.f32.mrb[0].mxu0
        %v1844 = vadd.f32 %v1499, %v1843
        %v1845 = vpop.f32.mrb[0].mxu0
        %v1846 = vpop.f32.mrb[0].mxu0
        %v1847 = vadd.f32 %v1499, %v1846
        %v1848 = vpop.f32.mrb[0].mxu0
        %1849 = vmatprep.mubr.bf16.mxu0 0
        %1850 = vmatmul.mubr.bf16.gmra.mrb[0].mxu0 %v1592
        %v1851 = vpop.f32.mrb[0].mxu0
        %v1852 = vadd.f32 %v1499, %v1851
        %v1853 = vpop.f32.mrb[0].mxu0
        %v1854 = vpop.f32.mrb[0].mxu0
        %v1855 = vadd.f32 %v1499, %v1854
        %v1856 = vpop.f32.mrb[0].mxu0
        %1857 = vmatprep.mubr.bf16.mxu0 0
        %1858 = vmatmul.mubr.bf16.gmra.mrb[0].mxu0 %v1595
        %v1859 = vpop.f32.mrb[0].mxu0
        %v1860 = vadd.f32 %v1499, %v1859
        %v1861 = vpop.f32.mrb[0].mxu0
        %v1862 = vpop.f32.mrb[0].mxu0
        %v1863 = vadd.f32 %v1499, %v1862
        %v1864 = vpop.f32.mrb[0].mxu0
        %1865 = vmatprep.mubr.bf16.mxu0 0
        %1866 = vmatmul.mubr.bf16.gmra.mrb[0].mxu0 %v1598
        %v1867 = vpop.f32.mrb[0].mxu0
        %v1868 = vadd.f32 %v1499, %v1867
        %v1869 = vpop.f32.mrb[0].mxu0
        %v1870 = vpop.f32.mrb[0].mxu0
        %v1871 = vadd.f32 %v1499, %v1870
        %v1872 = vpop.f32.mrb[0].mxu0
        %1873 = vmatprep.mubr.bf16.mxu0 0
        %1874 = vmatmul.mubr.bf16.gmra.mrb[0].mxu0 %v1601
        %v1875 = vpop.f32.mrb[0].mxu0
        %v1876 = vadd.f32 %v1499, %v1875
        %v1877 = vpop.f32.mrb[0].mxu0
        %v1878 = vpop.f32.mrb[0].mxu0
        %v1879 = vadd.f32 %v1499, %v1878
        %v1880 = vpop.f32.mrb[0].mxu0
        %1881 = vmatprep.mubr.bf16.mxu0 0
        %1882 = vmatmul.mubr.bf16.gmra.mrb[0].mxu0 %v1604
        %v1883 = vpop.f32.mrb[0].mxu0
        %v1884 = vadd.f32 %v1499, %v1883
        %v1885 = vpop.f32.mrb[0].mxu0
        %v1886 = vpop.f32.mrb[0].mxu0
        %v1887 = vadd.f32 %v1499, %v1886
        %v1888 = vpop.f32.mrb[0].mxu0
        %1889 = vmatprep.mubr.bf16.mxu0 0
        %1890 = vmatmul.mubr.bf16.gmra.mrb[0].mxu0 %v1607
        %v1891 = vpop.f32.mrb[0].mxu0
        %v1892 = vadd.f32 %v1499, %v1891
        %v1893 = vpop.f32.mrb[0].mxu0
        %v1894 = vpop.f32.mrb[0].mxu0
        %v1895 = vadd.f32 %v1499, %v1894
        %v1896 = vpop.f32.mrb[0].mxu0
        %1897 = vdwg.mxu0
        %1898 = vst.msk [vmem:[%s406] sm:$0xff] %vm484, %v1644
        %1899 = vst.msk [vmem:[%s406 + $0x8] sm:$0xff] %vm484, %v1647
        %1900 = vst.msk [vmem:[%s406 + $0x10] sm:$0xff] %vm484, %v1652
        %1901 = vst.msk [vmem:[%s406 + $0x18] sm:$0xff] %vm484, %v1655
        %1902 = vst.msk [vmem:[%s406 + $0x20] sm:$0xff] %vm484, %v1660
        %1903 = vst.msk [vmem:[%s406 + $0x28] sm:$0xff] %vm484, %v1663
        %1904 = vst.msk [vmem:[%s406 + $0x30] sm:$0xff] %vm484, %v1668
        %1905 = vst.msk [vmem:[%s406 + $0x38] sm:$0xff] %vm484, %v1671
        %1906 = vst.msk [vmem:[%s406 + $0x40] sm:$0xff] %vm484, %v1676
        %1907 = vst.msk [vmem:[%s406 + $0x48] sm:$0xff] %vm484, %v1679
        %1908 = vst.msk [vmem:[%s406 + $0x50] sm:$0xff] %vm484, %v1684
        %1909 = vst.msk [vmem:[%s406 + $0x58] sm:$0xff] %vm484, %v1687
        %1910 = vst.msk [vmem:[%s406 + $0x60] sm:$0xff] %vm484, %v1692
        %1911 = vst.msk [vmem:[%s406 + $0x68] sm:$0xff] %vm484, %v1695
        %1912 = vst.msk [vmem:[%s406 + $0x70] sm:$0xff] %vm484, %v1700
        %1913 = vst.msk [vmem:[%s406 + $0x78] sm:$0xff] %vm484, %v1703
        %1914 = vst.msk [vmem:[%s406 + $0x80] sm:$0xff] %vm484, %v1708
        %1915 = vst.msk [vmem:[%s406 + $0x88] sm:$0xff] %vm484, %v1711
        %1916 = vst.msk [vmem:[%s406 + $0x90] sm:$0xff] %vm484, %v1716
        %1917 = vst.msk [vmem:[%s406 + $0x98] sm:$0xff] %vm484, %v1719
        %1918 = vst.msk [vmem:[%s406 + $0xa0] sm:$0xff] %vm484, %v1724
        %1919 = vst.msk [vmem:[%s406 + $0xa8] sm:$0xff] %vm484, %v1727
        %1920 = vst.msk [vmem:[%s406 + $0xb0] sm:$0xff] %vm484, %v1732
        %1921 = vst.msk [vmem:[%s406 + $0xb8] sm:$0xff] %vm484, %v1735
        %1922 = vst.msk [vmem:[%s406 + $0xc0] sm:$0xff] %vm484, %v1740
        %1923 = vst.msk [vmem:[%s406 + $0xc8] sm:$0xff] %vm484, %v1743
        %1924 = vst.msk [vmem:[%s406 + $0xd0] sm:$0xff] %vm484, %v1748
        %1925 = vst.msk [vmem:[%s406 + $0xd8] sm:$0xff] %vm484, %v1751
        %1926 = vst.msk [vmem:[%s406 + $0xe0] sm:$0xff] %vm484, %v1756
        %1927 = vst.msk [vmem:[%s406 + $0xe8] sm:$0xff] %vm484, %v1759
        %1928 = vst.msk [vmem:[%s406 + $0xf0] sm:$0xff] %vm484, %v1764
        %1929 = vst.msk [vmem:[%s406 + $0xf8] sm:$0xff] %vm484, %v1767
        %1930 = vst.msk [vmem:[%s406 + $0x100] sm:$0xff] %vm484, %v1772
        %1931 = vst.msk [vmem:[%s406 + $0x108] sm:$0xff] %vm484, %v1775
        %1932 = vst.msk [vmem:[%s406 + $0x110] sm:$0xff] %vm484, %v1780
        %1933 = vst.msk [vmem:[%s406 + $0x118] sm:$0xff] %vm484, %v1783
        %1934 = vst.msk [vmem:[%s406 + $0x120] sm:$0xff] %vm484, %v1788
        %1935 = vst.msk [vmem:[%s406 + $0x128] sm:$0xff] %vm484, %v1791
        %1936 = vst.msk [vmem:[%s406 + $0x130] sm:$0xff] %vm484, %v1796
        %1937 = vst.msk [vmem:[%s406 + $0x138] sm:$0xff] %vm484, %v1799
        %1938 = vst.msk [vmem:[%s406 + $0x140] sm:$0xff] %vm484, %v1804
        %1939 = vst.msk [vmem:[%s406 + $0x148] sm:$0xff] %vm484, %v1807
        %1940 = vst.msk [vmem:[%s406 + $0x150] sm:$0xff] %vm484, %v1812
        %1941 = vst.msk [vmem:[%s406 + $0x158] sm:$0xff] %vm484, %v1815
        %1942 = vst.msk [vmem:[%s406 + $0x160] sm:$0xff] %vm484, %v1820
        %1943 = vst.msk [vmem:[%s406 + $0x168] sm:$0xff] %vm484, %v1823
        %1944 = vst.msk [vmem:[%s406 + $0x170] sm:$0xff] %vm484, %v1828
        %1945 = vst.msk [vmem:[%s406 + $0x178] sm:$0xff] %vm484, %v1831
        %1946 = vst.msk [vmem:[%s406 + $0x180] sm:$0xff] %vm484, %v1836
        %1947 = vst.msk [vmem:[%s406 + $0x188] sm:$0xff] %vm484, %v1839
        %1948 = vst.msk [vmem:[%s406 + $0x190] sm:$0xff] %vm484, %v1844
        %1949 = vst.msk [vmem:[%s406 + $0x198] sm:$0xff] %vm484, %v1847
        %1950 = vst.msk [vmem:[%s406 + $0x1a0] sm:$0xff] %vm484, %v1852
        %1951 = vst.msk [vmem:[%s406 + $0x1a8] sm:$0xff] %vm484, %v1855
        %1952 = vst.msk [vmem:[%s406 + $0x1b0] sm:$0xff] %vm484, %v1860
        %1953 = vst.msk [vmem:[%s406 + $0x1b8] sm:$0xff] %vm484, %v1863
        %1954 = vst.msk [vmem:[%s406 + $0x1c0] sm:$0xff] %vm484, %v1868
        %1955 = vst.msk [vmem:[%s406 + $0x1c8] sm:$0xff] %vm484, %v1871
        %1956 = vst.msk [vmem:[%s406 + $0x1d0] sm:$0xff] %vm484, %v1876
        %1957 = vst.msk [vmem:[%s406 + $0x1d8] sm:$0xff] %vm484, %v1879
        %1958 = vst.msk [vmem:[%s406 + $0x1e0] sm:$0xff] %vm484, %v1884
        %1959 = vst.msk [vmem:[%s406 + $0x1e8] sm:$0xff] %vm484, %v1887
        %1960 = vst.msk [vmem:[%s406 + $0x1f0] sm:$0xff] %vm484, %v1892
        %1961 = vst.msk [vmem:[%s406 + $0x1f8] sm:$0xff] %vm484, %v1895
        %v1962 = vld [vmem:[#allocation11] sm:$0xf]
        %v1963 = vld [vmem:[#allocation11 + $0x4] sm:$0xf]
        %v1964 = vld [vmem:[#allocation11 + $0x8] sm:$0xf]
        %v1965 = vld [vmem:[#allocation11 + $0xc] sm:$0xf]
        %v1966 = vld [vmem:[#allocation13] sm:$0x1]
        %v1968 = vlaneseq
        %v1969 = vshrl.u32 %v1968, 7
        %v1970 = vsub.s32 0, %v1969
        %v1971 = vrot.slane %v1966, %v1970
        %v1977 = vunpack.c.l.b16 %v1962
        %v1978 = vunpack.c.l.b16 %v1963
        %v1979 = vunpack.c.l.b16 %v1964
        %v1980 = vunpack.c.l.b16 %v1965
        %v1981 = vpack.c.b16 %v1978, %v1977
        %v1982 = vpack.c.b16 %v1980, %v1979
        %1985 = vmatprep.subr.bf16.mxu0 0
        %1986 = vmatpush1.bf16.msra.mxu0 %v1981
        %1987 = vmatprep.subr.bf16.mxu0 0
        %1988 = vmatpush1.bf16.msra.mxu0 %v1982
        %1989 = vmatprep.subr.bf16.mxu0 0
        %1990 = vmatpush1.bf16.msra.mxu0 0
        %1991 = vmatprep.subr.bf16.mxu0 0
        %1992 = vmatpush1.bf16.msra.mxu0 0
        %1993 = vmatprep.subr.bf16.mxu0 0
        %1994 = vmatpush1.bf16.msra.mxu0 0
        %1995 = vmatprep.subr.bf16.mxu0 0
        %1996 = vmatpush1.bf16.msra.mxu0 0
        %1997 = vmatprep.subr.bf16.mxu0 0
        %1998 = vmatpush1.bf16.msra.mxu0 0
        %1999 = vmatprep.subr.bf16.mxu0 0
        %2000 = vmatpush1.bf16.msra.mxu0 0
        %2001 = vmatprep.subr.bf16.mxu0 0
        %2002 = vmatpush1.bf16.msra.mxu0 0
        %2003 = vmatprep.subr.bf16.mxu0 0
        %2004 = vmatpush1.bf16.msra.mxu0 0
        %2005 = vmatprep.subr.bf16.mxu0 0
        %2006 = vmatpush1.bf16.msra.mxu0 0
        %2007 = vmatprep.subr.bf16.mxu0 0
        %2008 = vmatpush1.bf16.msra.mxu0 0
        %2009 = vmatprep.subr.bf16.mxu0 0
        %2010 = vmatpush1.bf16.msra.mxu0 0
        %2011 = vmatprep.subr.bf16.mxu0 0
        %2012 = vmatpush1.bf16.msra.mxu0 0
        %2013 = vmatprep.subr.bf16.mxu0 0
        %2014 = vmatpush1.bf16.msra.mxu0 0
        %2015 = vmatprep.subr.bf16.mxu0 0
        %2016 = vmatpush1.bf16.msra.mxu0 0
        %2017 = vmatprep.mubr.bf16.mxu0 0
        %2018 = vmatmul.mubr.bf16.gmra.mrb[0].mxu0 %v1514
        %v2019 = vpop.f32.mrb[0].mxu0
        %v2020 = vadd.f32 %v1971, %v2019
        %v2021 = vpop.f32.mrb[0].mxu0
        %v2022 = vpop.f32.mrb[0].mxu0
        %v2023 = vadd.f32 %v1971, %v2022
        %v2024 = vpop.f32.mrb[0].mxu0
        %2025 = vmatprep.mubr.bf16.mxu0 0
        %2026 = vmatmul.mubr.bf16.gmra.mrb[0].mxu0 %v1517
        %v2027 = vpop.f32.mrb[0].mxu0
        %v2028 = vadd.f32 %v1971, %v2027
        %v2029 = vpop.f32.mrb[0].mxu0
        %v2030 = vpop.f32.mrb[0].mxu0
        %v2031 = vadd.f32 %v1971, %v2030
        %v2032 = vpop.f32.mrb[0].mxu0
        %2033 = vmatprep.mubr.bf16.mxu0 0
        %2034 = vmatmul.mubr.bf16.gmra.mrb[0].mxu0 %v1520
        %v2035 = vpop.f32.mrb[0].mxu0
        %v2036 = vadd.f32 %v1971, %v2035
        %v2037 = vpop.f32.mrb[0].mxu0
        %v2038 = vpop.f32.mrb[0].mxu0
        %v2039 = vadd.f32 %v1971, %v2038
        %v2040 = vpop.f32.mrb[0].mxu0
        %2041 = vmatprep.mubr.bf16.mxu0 0
        %2042 = vmatmul.mubr.bf16.gmra.mrb[0].mxu0 %v1523
        %v2043 = vpop.f32.mrb[0].mxu0
        %v2044 = vadd.f32 %v1971, %v2043
        %v2045 = vpop.f32.mrb[0].mxu0
        %v2046 = vpop.f32.mrb[0].mxu0
        %v2047 = vadd.f32 %v1971, %v2046
        %v2048 = vpop.f32.mrb[0].mxu0
        %2049 = vmatprep.mubr.bf16.mxu0 0
        %2050 = vmatmul.mubr.bf16.gmra.mrb[0].mxu0 %v1526
        %v2051 = vpop.f32.mrb[0].mxu0
        %v2052 = vadd.f32 %v1971, %v2051
        %v2053 = vpop.f32.mrb[0].mxu0
        %v2054 = vpop.f32.mrb[0].mxu0
        %v2055 = vadd.f32 %v1971, %v2054
        %v2056 = vpop.f32.mrb[0].mxu0
        %2057 = vmatprep.mubr.bf16.mxu0 0
        %2058 = vmatmul.mubr.bf16.gmra.mrb[0].mxu0 %v1529
        %v2059 = vpop.f32.mrb[0].mxu0
        %v2060 = vadd.f32 %v1971, %v2059
        %v2061 = vpop.f32.mrb[0].mxu0
        %v2062 = vpop.f32.mrb[0].mxu0
        %v2063 = vadd.f32 %v1971, %v2062
        %v2064 = vpop.f32.mrb[0].mxu0
        %2065 = vmatprep.mubr.bf16.mxu0 0
        %2066 = vmatmul.mubr.bf16.gmra.mrb[0].mxu0 %v1532
        %v2067 = vpop.f32.mrb[0].mxu0
        %v2068 = vadd.f32 %v1971, %v2067
        %v2069 = vpop.f32.mrb[0].mxu0
        %v2070 = vpop.f32.mrb[0].mxu0
        %v2071 = vadd.f32 %v1971, %v2070
        %v2072 = vpop.f32.mrb[0].mxu0
        %2073 = vmatprep.mubr.bf16.mxu0 0
        %2074 = vmatmul.mubr.bf16.gmra.mrb[0].mxu0 %v1535
        %v2075 = vpop.f32.mrb[0].mxu0
        %v2076 = vadd.f32 %v1971, %v2075
        %v2077 = vpop.f32.mrb[0].mxu0
        %v2078 = vpop.f32.mrb[0].mxu0
        %v2079 = vadd.f32 %v1971, %v2078
        %v2080 = vpop.f32.mrb[0].mxu0
        %2081 = vmatprep.mubr.bf16.mxu0 0
        %2082 = vmatmul.mubr.bf16.gmra.mrb[0].mxu0 %v1538
        %v2083 = vpop.f32.mrb[0].mxu0
        %v2084 = vadd.f32 %v1971, %v2083
        %v2085 = vpop.f32.mrb[0].mxu0
        %v2086 = vpop.f32.mrb[0].mxu0
        %v2087 = vadd.f32 %v1971, %v2086
        %v2088 = vpop.f32.mrb[0].mxu0
        %2089 = vmatprep.mubr.bf16.mxu0 0
        %2090 = vmatmul.mubr.bf16.gmra.mrb[0].mxu0 %v1541
        %v2091 = vpop.f32.mrb[0].mxu0
        %v2092 = vadd.f32 %v1971, %v2091
        %v2093 = vpop.f32.mrb[0].mxu0
        %v2094 = vpop.f32.mrb[0].mxu0
        %v2095 = vadd.f32 %v1971, %v2094
        %v2096 = vpop.f32.mrb[0].mxu0
        %2097 = vmatprep.mubr.bf16.mxu0 0
        %2098 = vmatmul.mubr.bf16.gmra.mrb[0].mxu0 %v1544
        %v2099 = vpop.f32.mrb[0].mxu0
        %v2100 = vadd.f32 %v1971, %v2099
        %v2101 = vpop.f32.mrb[0].mxu0
        %v2102 = vpop.f32.mrb[0].mxu0
        %v2103 = vadd.f32 %v1971, %v2102
        %v2104 = vpop.f32.mrb[0].mxu0
        %2105 = vmatprep.mubr.bf16.mxu0 0
        %2106 = vmatmul.mubr.bf16.gmra.mrb[0].mxu0 %v1547
        %v2107 = vpop.f32.mrb[0].mxu0
        %v2108 = vadd.f32 %v1971, %v2107
        %v2109 = vpop.f32.mrb[0].mxu0
        %v2110 = vpop.f32.mrb[0].mxu0
        %v2111 = vadd.f32 %v1971, %v2110
        %v2112 = vpop.f32.mrb[0].mxu0
        %2113 = vmatprep.mubr.bf16.mxu0 0
        %2114 = vmatmul.mubr.bf16.gmra.mrb[0].mxu0 %v1550
        %v2115 = vpop.f32.mrb[0].mxu0
        %v2116 = vadd.f32 %v1971, %v2115
        %v2117 = vpop.f32.mrb[0].mxu0
        %v2118 = vpop.f32.mrb[0].mxu0
        %v2119 = vadd.f32 %v1971, %v2118
        %v2120 = vpop.f32.mrb[0].mxu0
        %2121 = vmatprep.mubr.bf16.mxu0 0
        %2122 = vmatmul.mubr.bf16.gmra.mrb[0].mxu0 %v1553
        %v2123 = vpop.f32.mrb[0].mxu0
        %v2124 = vadd.f32 %v1971, %v2123
        %v2125 = vpop.f32.mrb[0].mxu0
        %v2126 = vpop.f32.mrb[0].mxu0
        %v2127 = vadd.f32 %v1971, %v2126
        %v2128 = vpop.f32.mrb[0].mxu0
        %2129 = vmatprep.mubr.bf16.mxu0 0
        %2130 = vmatmul.mubr.bf16.gmra.mrb[0].mxu0 %v1556
        %v2131 = vpop.f32.mrb[0].mxu0
        %v2132 = vadd.f32 %v1971, %v2131
        %v2133 = vpop.f32.mrb[0].mxu0
        %v2134 = vpop.f32.mrb[0].mxu0
        %v2135 = vadd.f32 %v1971, %v2134
        %v2136 = vpop.f32.mrb[0].mxu0
        %2137 = vmatprep.mubr.bf16.mxu0 0
        %2138 = vmatmul.mubr.bf16.gmra.mrb[0].mxu0 %v1559
        %v2139 = vpop.f32.mrb[0].mxu0
        %v2140 = vadd.f32 %v1971, %v2139
        %v2141 = vpop.f32.mrb[0].mxu0
        %v2142 = vpop.f32.mrb[0].mxu0
        %v2143 = vadd.f32 %v1971, %v2142
        %v2144 = vpop.f32.mrb[0].mxu0
        %2145 = vmatprep.mubr.bf16.mxu0 0
        %2146 = vmatmul.mubr.bf16.gmra.mrb[0].mxu0 %v1562
        %v2147 = vpop.f32.mrb[0].mxu0
        %v2148 = vadd.f32 %v1971, %v2147
        %v2149 = vpop.f32.mrb[0].mxu0
        %v2150 = vpop.f32.mrb[0].mxu0
        %v2151 = vadd.f32 %v1971, %v2150
        %v2152 = vpop.f32.mrb[0].mxu0
        %2153 = vmatprep.mubr.bf16.mxu0 0
        %2154 = vmatmul.mubr.bf16.gmra.mrb[0].mxu0 %v1565
        %v2155 = vpop.f32.mrb[0].mxu0
        %v2156 = vadd.f32 %v1971, %v2155
        %v2157 = vpop.f32.mrb[0].mxu0
        %v2158 = vpop.f32.mrb[0].mxu0
        %v2159 = vadd.f32 %v1971, %v2158
        %v2160 = vpop.f32.mrb[0].mxu0
        %2161 = vmatprep.mubr.bf16.mxu0 0
        %2162 = vmatmul.mubr.bf16.gmra.mrb[0].mxu0 %v1568
        %v2163 = vpop.f32.mrb[0].mxu0
        %v2164 = vadd.f32 %v1971, %v2163
        %v2165 = vpop.f32.mrb[0].mxu0
        %v2166 = vpop.f32.mrb[0].mxu0
        %v2167 = vadd.f32 %v1971, %v2166
        %v2168 = vpop.f32.mrb[0].mxu0
        %2169 = vmatprep.mubr.bf16.mxu0 0
        %2170 = vmatmul.mubr.bf16.gmra.mrb[0].mxu0 %v1571
        %v2171 = vpop.f32.mrb[0].mxu0
        %v2172 = vadd.f32 %v1971, %v2171
        %v2173 = vpop.f32.mrb[0].mxu0
        %v2174 = vpop.f32.mrb[0].mxu0
        %v2175 = vadd.f32 %v1971, %v2174
        %v2176 = vpop.f32.mrb[0].mxu0
        %2177 = vmatprep.mubr.bf16.mxu0 0
        %2178 = vmatmul.mubr.bf16.gmra.mrb[0].mxu0 %v1574
        %v2179 = vpop.f32.mrb[0].mxu0
        %v2180 = vadd.f32 %v1971, %v2179
        %v2181 = vpop.f32.mrb[0].mxu0
        %v2182 = vpop.f32.mrb[0].mxu0
        %v2183 = vadd.f32 %v1971, %v2182
        %v2184 = vpop.f32.mrb[0].mxu0
        %2185 = vmatprep.mubr.bf16.mxu0 0
        %2186 = vmatmul.mubr.bf16.gmra.mrb[0].mxu0 %v1577
        %v2187 = vpop.f32.mrb[0].mxu0
        %v2188 = vadd.f32 %v1971, %v2187
        %v2189 = vpop.f32.mrb[0].mxu0
        %v2190 = vpop.f32.mrb[0].mxu0
        %v2191 = vadd.f32 %v1971, %v2190
        %v2192 = vpop.f32.mrb[0].mxu0
        %2193 = vmatprep.mubr.bf16.mxu0 0
        %2194 = vmatmul.mubr.bf16.gmra.mrb[0].mxu0 %v1580
        %v2195 = vpop.f32.mrb[0].mxu0
        %v2196 = vadd.f32 %v1971, %v2195
        %v2197 = vpop.f32.mrb[0].mxu0
        %v2198 = vpop.f32.mrb[0].mxu0
        %v2199 = vadd.f32 %v1971, %v2198
        %v2200 = vpop.f32.mrb[0].mxu0
        %2201 = vmatprep.mubr.bf16.mxu0 0
        %2202 = vmatmul.mubr.bf16.gmra.mrb[0].mxu0 %v1583
        %v2203 = vpop.f32.mrb[0].mxu0
        %v2204 = vadd.f32 %v1971, %v2203
        %v2205 = vpop.f32.mrb[0].mxu0
        %v2206 = vpop.f32.mrb[0].mxu0
        %v2207 = vadd.f32 %v1971, %v2206
        %v2208 = vpop.f32.mrb[0].mxu0
        %2209 = vmatprep.mubr.bf16.mxu0 0
        %2210 = vmatmul.mubr.bf16.gmra.mrb[0].mxu0 %v1586
        %v2211 = vpop.f32.mrb[0].mxu0
        %v2212 = vadd.f32 %v1971, %v2211
        %v2213 = vpop.f32.mrb[0].mxu0
        %v2214 = vpop.f32.mrb[0].mxu0
        %v2215 = vadd.f32 %v1971, %v2214
        %v2216 = vpop.f32.mrb[0].mxu0
        %2217 = vmatprep.mubr.bf16.mxu0 0
        %2218 = vmatmul.mubr.bf16.gmra.mrb[0].mxu0 %v1589
        %v2219 = vpop.f32.mrb[0].mxu0
        %v2220 = vadd.f32 %v1971, %v2219
        %v2221 = vpop.f32.mrb[0].mxu0
        %v2222 = vpop.f32.mrb[0].mxu0
        %v2223 = vadd.f32 %v1971, %v2222
        %v2224 = vpop.f32.mrb[0].mxu0
        %2225 = vmatprep.mubr.bf16.mxu0 0
        %2226 = vmatmul.mubr.bf16.gmra.mrb[0].mxu0 %v1592
        %v2227 = vpop.f32.mrb[0].mxu0
        %v2228 = vadd.f32 %v1971, %v2227
        %v2229 = vpop.f32.mrb[0].mxu0
        %v2230 = vpop.f32.mrb[0].mxu0
        %v2231 = vadd.f32 %v1971, %v2230
        %v2232 = vpop.f32.mrb[0].mxu0
        %2233 = vmatprep.mubr.bf16.mxu0 0
        %2234 = vmatmul.mubr.bf16.gmra.mrb[0].mxu0 %v1595
        %v2235 = vpop.f32.mrb[0].mxu0
        %v2236 = vadd.f32 %v1971, %v2235
        %v2237 = vpop.f32.mrb[0].mxu0
        %v2238 = vpop.f32.mrb[0].mxu0
        %v2239 = vadd.f32 %v1971, %v2238
        %v2240 = vpop.f32.mrb[0].mxu0
        %2241 = vmatprep.mubr.bf16.mxu0 0
        %2242 = vmatmul.mubr.bf16.gmra.mrb[0].mxu0 %v1598
        %v2243 = vpop.f32.mrb[0].mxu0
        %v2244 = vadd.f32 %v1971, %v2243
        %v2245 = vpop.f32.mrb[0].mxu0
        %v2246 = vpop.f32.mrb[0].mxu0
        %v2247 = vadd.f32 %v1971, %v2246
        %v2248 = vpop.f32.mrb[0].mxu0
        %2249 = vmatprep.mubr.bf16.mxu0 0
        %2250 = vmatmul.mubr.bf16.gmra.mrb[0].mxu0 %v1601
        %v2251 = vpop.f32.mrb[0].mxu0
        %v2252 = vadd.f32 %v1971, %v2251
        %v2253 = vpop.f32.mrb[0].mxu0
        %v2254 = vpop.f32.mrb[0].mxu0
        %v2255 = vadd.f32 %v1971, %v2254
        %v2256 = vpop.f32.mrb[0].mxu0
        %2257 = vmatprep.mubr.bf16.mxu0 0
        %2258 = vmatmul.mubr.bf16.gmra.mrb[0].mxu0 %v1604
        %v2259 = vpop.f32.mrb[0].mxu0
        %v2260 = vadd.f32 %v1971, %v2259
        %v2261 = vpop.f32.mrb[0].mxu0
        %v2262 = vpop.f32.mrb[0].mxu0
        %v2263 = vadd.f32 %v1971, %v2262
        %v2264 = vpop.f32.mrb[0].mxu0
        %2265 = vmatprep.mubr.bf16.mxu0 0
        %2266 = vmatmul.mubr.bf16.gmra.mrb[0].mxu0 %v1607
        %v2267 = vpop.f32.mrb[0].mxu0
        %v2268 = vadd.f32 %v1971, %v2267
        %v2269 = vpop.f32.mrb[0].mxu0
        %v2270 = vpop.f32.mrb[0].mxu0
        %v2271 = vadd.f32 %v1971, %v2270
        %v2272 = vpop.f32.mrb[0].mxu0
        %2273 = vdwg.mxu0
        %vm2274 = vcmask 523264
        %2275 = vst.msk [vmem:[%s413] sm:$0xff] %vm2274, %v2020
        %2276 = vst.msk [vmem:[%s413 + $0x8] sm:$0xff] %vm2274, %v2023
        %2277 = vst.msk [vmem:[%s413 + $0x10] sm:$0xff] %vm2274, %v2028
        %2278 = vst.msk [vmem:[%s413 + $0x18] sm:$0xff] %vm2274, %v2031
        %2279 = vst.msk [vmem:[%s413 + $0x20] sm:$0xff] %vm2274, %v2036
        %2280 = vst.msk [vmem:[%s413 + $0x28] sm:$0xff] %vm2274, %v2039
        %2281 = vst.msk [vmem:[%s413 + $0x30] sm:$0xff] %vm2274, %v2044
        %2282 = vst.msk [vmem:[%s413 + $0x38] sm:$0xff] %vm2274, %v2047
        %2283 = vst.msk [vmem:[%s413 + $0x40] sm:$0xff] %vm2274, %v2052
        %2284 = vst.msk [vmem:[%s413 + $0x48] sm:$0xff] %vm2274, %v2055
        %2285 = vst.msk [vmem:[%s413 + $0x50] sm:$0xff] %vm2274, %v2060
        %2286 = vst.msk [vmem:[%s413 + $0x58] sm:$0xff] %vm2274, %v2063
        %2287 = vst.msk [vmem:[%s413 + $0x60] sm:$0xff] %vm2274, %v2068
        %2288 = vst.msk [vmem:[%s413 + $0x68] sm:$0xff] %vm2274, %v2071
        %2289 = vst.msk [vmem:[%s413 + $0x70] sm:$0xff] %vm2274, %v2076
        %2290 = vst.msk [vmem:[%s413 + $0x78] sm:$0xff] %vm2274, %v2079
        %2291 = vst.msk [vmem:[%s413 + $0x80] sm:$0xff] %vm2274, %v2084
        %2292 = vst.msk [vmem:[%s413 + $0x88] sm:$0xff] %vm2274, %v2087
        %2293 = vst.msk [vmem:[%s413 + $0x90] sm:$0xff] %vm2274, %v2092
        %2294 = vst.msk [vmem:[%s413 + $0x98] sm:$0xff] %vm2274, %v2095
        %2295 = vst.msk [vmem:[%s413 + $0xa0] sm:$0xff] %vm2274, %v2100
        %2296 = vst.msk [vmem:[%s413 + $0xa8] sm:$0xff] %vm2274, %v2103
        %2297 = vst.msk [vmem:[%s413 + $0xb0] sm:$0xff] %vm2274, %v2108
        %2298 = vst.msk [vmem:[%s413 + $0xb8] sm:$0xff] %vm2274, %v2111
        %2299 = vst.msk [vmem:[%s413 + $0xc0] sm:$0xff] %vm2274, %v2116
        %2300 = vst.msk [vmem:[%s413 + $0xc8] sm:$0xff] %vm2274, %v2119
        %2301 = vst.msk [vmem:[%s413 + $0xd0] sm:$0xff] %vm2274, %v2124
        %2302 = vst.msk [vmem:[%s413 + $0xd8] sm:$0xff] %vm2274, %v2127
        %2303 = vst.msk [vmem:[%s413 + $0xe0] sm:$0xff] %vm2274, %v2132
        %2304 = vst.msk [vmem:[%s413 + $0xe8] sm:$0xff] %vm2274, %v2135
        %2305 = vst.msk [vmem:[%s413 + $0xf0] sm:$0xff] %vm2274, %v2140
        %2306 = vst.msk [vmem:[%s413 + $0xf8] sm:$0xff] %vm2274, %v2143
        %2307 = vst.msk [vmem:[%s413 + $0x100] sm:$0xff] %vm2274, %v2148
        %2308 = vst.msk [vmem:[%s413 + $0x108] sm:$0xff] %vm2274, %v2151
        %2309 = vst.msk [vmem:[%s413 + $0x110] sm:$0xff] %vm2274, %v2156
        %2310 = vst.msk [vmem:[%s413 + $0x118] sm:$0xff] %vm2274, %v2159
        %2311 = vst.msk [vmem:[%s413 + $0x120] sm:$0xff] %vm2274, %v2164
        %2312 = vst.msk [vmem:[%s413 + $0x128] sm:$0xff] %vm2274, %v2167
        %2313 = vst.msk [vmem:[%s413 + $0x130] sm:$0xff] %vm2274, %v2172
        %2314 = vst.msk [vmem:[%s413 + $0x138] sm:$0xff] %vm2274, %v2175
        %2315 = vst.msk [vmem:[%s413 + $0x140] sm:$0xff] %vm2274, %v2180
        %2316 = vst.msk [vmem:[%s413 + $0x148] sm:$0xff] %vm2274, %v2183
        %2317 = vst.msk [vmem:[%s413 + $0x150] sm:$0xff] %vm2274, %v2188
        %2318 = vst.msk [vmem:[%s413 + $0x158] sm:$0xff] %vm2274, %v2191
        %2319 = vst.msk [vmem:[%s413 + $0x160] sm:$0xff] %vm2274, %v2196
        %2320 = vst.msk [vmem:[%s413 + $0x168] sm:$0xff] %vm2274, %v2199
        %2321 = vst.msk [vmem:[%s413 + $0x170] sm:$0xff] %vm2274, %v2204
        %2322 = vst.msk [vmem:[%s413 + $0x178] sm:$0xff] %vm2274, %v2207
        %2323 = vst.msk [vmem:[%s413 + $0x180] sm:$0xff] %vm2274, %v2212
        %2324 = vst.msk [vmem:[%s413 + $0x188] sm:$0xff] %vm2274, %v2215
        %2325 = vst.msk [vmem:[%s413 + $0x190] sm:$0xff] %vm2274, %v2220
        %2326 = vst.msk [vmem:[%s413 + $0x198] sm:$0xff] %vm2274, %v2223
        %2327 = vst.msk [vmem:[%s413 + $0x1a0] sm:$0xff] %vm2274, %v2228
        %2328 = vst.msk [vmem:[%s413 + $0x1a8] sm:$0xff] %vm2274, %v2231
        %2329 = vst.msk [vmem:[%s413 + $0x1b0] sm:$0xff] %vm2274, %v2236
        %2330 = vst.msk [vmem:[%s413 + $0x1b8] sm:$0xff] %vm2274, %v2239
        %2331 = vst.msk [vmem:[%s413 + $0x1c0] sm:$0xff] %vm2274, %v2244
        %2332 = vst.msk [vmem:[%s413 + $0x1c8] sm:$0xff] %vm2274, %v2247
        %2333 = vst.msk [vmem:[%s413 + $0x1d0] sm:$0xff] %vm2274, %v2252
        %2334 = vst.msk [vmem:[%s413 + $0x1d8] sm:$0xff] %vm2274, %v2255
        %2335 = vst.msk [vmem:[%s413 + $0x1e0] sm:$0xff] %vm2274, %v2260
        %2336 = vst.msk [vmem:[%s413 + $0x1e8] sm:$0xff] %vm2274, %v2263
        %2337 = vst.msk [vmem:[%s413 + $0x1f0] sm:$0xff] %vm2274, %v2268
        %2338 = vst.msk [vmem:[%s413 + $0x1f8] sm:$0xff] %vm2274, %v2271
        %s2339 = sand.u32 %s192, 1
        %s2340 = scalar_lea.sflag [#allocation4], %s2339
        %s2341 = sand.u32 %s192, 1
        %s2342 = smul.addr %s2341, 512
        %s2343 = scalar_lea.vmem [#allocation14], %s2342
        %s2344 = sand.u32 %s218, 1
        %s2345 = scalar_lea.sflag [#allocation16], %s2344
        %s2346 = sand.u32 %s218, 1
        %s2347 = smul.addr %s2346, 512
        %s2348 = scalar_lea.vmem [#allocation15], %s2347
        // Predicated region
        $region77: #{tpu_custom_call.1} parent=47 // pred_check
          %p2349 = pneg %p202
        $region78: #{tpu_custom_call.1} parent=47 // pred_check_branch
          %2351 = sbr.rel (%p2349) target = $region80
        $region79: #{tpu_custom_call.1} parent=47 // pred_region
          %s2352 = smul.u32 64, %s32
          %s2354 = ssub.s32 8192, 8192
          %2355 = vsyncadd %s2340, %s2354
          %s2356 = smul.addr %s2352, 128
          %s2357 = scalar_lea.hbm %s7, %s2356
          %s2358 = sshll.u32 %s2343, 4
          %s2359 = int_to_ptr.vmem [resolvable:$true] %s2358
          %2364 = dma.vmem_to_hbm [thread:$0]  %s2359, 8192, %s2357, %s2340, 128, 128, 8
        $region80: #{tpu_custom_call.1} parent=47 // pred_fallthru
          _
        // Predicated region
        $region81: #{tpu_custom_call.1} parent=47 // pred_check
          %p2365 = pneg %p228
        $region82: #{tpu_custom_call.1} parent=47 // pred_check_branch
          %2367 = sbr.rel (%p2365) target = $region84
        $region83: #{tpu_custom_call.1} parent=47 // pred_region
          %s2368 = smul.u32 64, %s32
          %s2370 = ssub.s32 8192, 8192
          %2371 = vsyncadd %s2345, %s2370
          %s2372 = smul.addr %s2368, 128
          %s2373 = scalar_lea.hbm %s8, %s2372
          %s2374 = sshll.u32 %s2348, 4
          %s2375 = int_to_ptr.vmem [resolvable:$true] %s2374
          %2380 = dma.vmem_to_hbm [thread:$0]  %s2375, 8192, %s2373, %s2345, 128, 128, 8
        $region84: #{tpu_custom_call.1} parent=47 // pred_fallthru
          _
      $region48: #{tpu_custom_call.1} parent=5 // pred_fallthru
        _
      %p2381 = scmp.le.s32.totalorder 2, %s27
      // Predicated region
      $region85: #{tpu_custom_call.1} parent=5 // pred_check
        %p2382 = pneg %p2381
      $region86: #{tpu_custom_call.1} parent=5 // pred_check_branch
        %2384 = sbr.rel (%p2382) target = $region88
      $region87: #{tpu_custom_call.1} parent=5 // pred_region
        %s2385 = ssub.s32 %s27, 2
        // Predicated region
        $region89: #{tpu_custom_call.1} parent=87 // pred_check
          %p2386 = pneg %p208
        $region90: #{tpu_custom_call.1} parent=87 // pred_check_branch
          %2388 = sbr.rel (%p2386) target = $region92
        $region91: #{tpu_custom_call.1} parent=87 // pred_region
          %s2389 = sand.u32 %s193, 1
          %s2390 = scalar_lea.sflag [#allocation4], %s2389
          %s2391 = sand.u32 %s193, 1
          %s2392 = smul.addr %s2391, 512
          %s2393 = scalar_lea.vmem [#allocation14], %s2392
          %2394 = dma.done %s2390, 8192
        $region92: #{tpu_custom_call.1} parent=87 // pred_fallthru
          _
        // Predicated region
        $region93: #{tpu_custom_call.1} parent=87 // pred_check
          %p2395 = pneg %p234
        $region94: #{tpu_custom_call.1} parent=87 // pred_check_branch
          %2397 = sbr.rel (%p2395) target = $region96
        $region95: #{tpu_custom_call.1} parent=87 // pred_region
          %s2398 = sand.u32 %s219, 1
          %s2399 = scalar_lea.sflag [#allocation16], %s2398
          %s2400 = sand.u32 %s219, 1
          %s2401 = smul.addr %s2400, 512
          %s2402 = scalar_lea.vmem [#allocation15], %s2401
          %2403 = dma.done %s2399, 8192
        $region96: #{tpu_custom_call.1} parent=87 // pred_fallthru
          _
      $region88: #{tpu_custom_call.1} parent=5 // pred_fallthru
        _
    $region6: #{tpu_custom_call.1} parent=1 // loop_footer
      %s31 = sadd.s32 1, %s27
    $region7: #{tpu_custom_call.1} parent=1 // loop_footer_branch
      %26 = sbr.rel target = $region3
    $region8: #{tpu_custom_call.1} parent=1 // loop_exit
      _
    %2404 = vsyncpa [#allocation3], 1
    %s2405 = scalar_lea.sflag [#allocation3], 1
    %2406 = vsyncpa %s2405, 1
    %2407 = vsyncpa [#allocation6], 1
    %2408 = vsyncpa [#allocation9], 1
    %2409 = vsyncpa [#allocation12], 1
    %2410 = vsyncpa [#allocation4], 1
    %s2411 = scalar_lea.sflag [#allocation4], 1
    %2412 = vsyncpa %s2411, 1
    %2413 = vsyncpa [#allocation16], 1
    %s2414 = scalar_lea.sflag [#allocation16], 1
    %2415 = vsyncpa %s2414, 1

</llo_original>
